<compile_context>
chip_gen: v7x
topology: tpu7x:2x2x1
jax: 0.10.0
libtpu: 0.0.40
codegen_flags: <defaults>
</compile_context>

<pallas_src>
import functools

import jax
import jax.numpy as jnp
from jax.experimental import pallas as pl
from jax.experimental.pallas import tpu as pltpu


def _round_up(x, m):
    return (x + m - 1) // m * m


def _vmem_capacity_bytes():
    try:
        return int(pltpu.get_tpu_info().vmem_capacity_bytes)
    except Exception:
        return 64 * 1024 * 1024  # conservative: v7x per-TensorCore VMEM


def _estimate_vmem_bytes(tb, n_pad, f_pad, o_pad, num_supports, num_matrices,
                         fused):
    """Rough per-grid-step VMEM footprint (blocks + scratch + live temps)."""
    bf16, f32 = 2, 4
    sup_b = num_supports * n_pad * n_pad * bf16           # invariant, 1 buffer
    w_b = num_matrices * f_pad * o_pad * bf16              # invariant, 1 buffer
    bias_b = 8 * 128 * f32
    x0_b = 2 * n_pad * tb * f_pad * bf16                   # double-buffered
    out_b = 2 * tb * n_pad * o_pad * f32                   # double-buffered
    if fused:
        scratch_b = tb * n_pad * num_matrices * f_pad * bf16
    else:
        scratch_b = tb * n_pad * f_pad * bf16 + tb * n_pad * o_pad * f32
    # Compiler-managed temporaries of the unrolled Chebyshev recurrence
    # (x_prev_f / x_cur_f / x_new_f in f32, plus bf16 casts).
    temps_b = 3 * n_pad * tb * f_pad * f32 + 2 * n_pad * tb * f_pad * bf16
    return sup_b + w_b + bias_b + x0_b + out_b + scratch_b + temps_b


def _diffusion_gconv_kernel(sup_ref, x0_ref, w_ref, b_ref, out_ref, *scratch,
                            num_supports, max_diffusion_step, batch_block,
                            n_pad, f_pad, fused_projection):
    """One grid step = TB batch elements.

    sup_ref   : (S, Np, Np)      bf16   grid-invariant
    x0_ref    : (Np, TB*Fp)      bf16   column index = tb*Fp + f
    w_ref     : (M*Fp, Op)       bf16   row index    = m*Fp + f  (grid-invariant)
    b_ref     : (1, Op)          f32    grid-invariant
    out_ref   : (TB*Np, Op)      f32    row index    = tb*Np + n
    scratch   : fused      -> (xstack (TB*Np, M*Fp) bf16,)
                per-order  -> (xslab (TB*Np, Fp) bf16, acc (TB*Np, Op) f32)
    """
    TB, Np, Fp = batch_block, n_pad, f_pad

    if fused_projection:
        (xstack_ref,) = scratch
    else:
        xslab_ref, acc_ref = scratch

    def scatter(dst_ref, val_bf16, col_off):
        # val_bf16: (Np, TB*Fp).  Copy batch tb's (Np, Fp) slab into rows
        # tb*Np:(tb+1)*Np.  Np is a multiple of 16 and Fp of 128, so every
        # offset is bf16-tile aligned -> plain unmasked VMEM copies.
        for tb in range(TB):
            dst_ref[tb * Np:(tb + 1) * Np, col_off:col_off + Fp] = (
                val_bf16[:, tb * Fp:(tb + 1) * Fp])

    def emit(val_bf16, m):
        if fused_projection:
            scatter(xstack_ref, val_bf16, m * Fp)
        else:
            scatter(xslab_ref, val_bf16, 0)
            part = jnp.dot(xslab_ref[...], w_ref[m * Fp:(m + 1) * Fp, :],
                           preferred_element_type=jnp.float32)
            if m == 0:
                acc_ref[...] = part
            else:
                acc_ref[...] += part

    x0 = x0_ref[...]                                     # (Np, TB*Fp) bf16
    emit(x0, 0)                                          # order m = 0 (identity)

    m = 1
    for s in range(num_supports):
        sup = sup_ref[s]                                 # (Np, Np) bf16
        # k = 1
        x_prev_f = x0.astype(jnp.float32)                # x_{k-2} kept in f32
        x_cur_f = jnp.dot(sup, x0, preferred_element_type=jnp.float32)
        x_cur_b = x_cur_f.astype(jnp.bfloat16)
        emit(x_cur_b, m)
        m += 1
        # k = 2 .. K : Chebyshev recurrence x_k = 2 * sup @ x_{k-1} - x_{k-2}
        for _ in range(2, max_diffusion_step + 1):
            x_new_f = (2.0 * jnp.dot(sup, x_cur_b,
                                     preferred_element_type=jnp.float32)
                       - x_prev_f)
            x_new_b = x_new_f.astype(jnp.bfloat16)
            emit(x_new_b, m)
            m += 1
            x_prev_f, x_cur_f, x_cur_b = x_cur_f, x_new_f, x_new_b

    if fused_projection:
        # Single fused projection over all orders: (TB*Np, M*Fp) @ (M*Fp, Op).
        acc = jnp.dot(xstack_ref[...], w_ref[...],
                      preferred_element_type=jnp.float32)
    else:
        acc = acc_ref[...]
    out_ref[...] = (acc + b_ref[...]).astype(out_ref.dtype)


def prepare_diffusion_gconv_params(supports, weight, biases, *, num_nodes,
                                   max_diffusion_step):
    """Static-per-RNN-step relayout of supports / weight / bias.

    Hoist this out of the DCGRU time loop: the result is reusable every step.
    """
    num_supports = supports.shape[0]
    num_matrices = num_supports * max_diffusion_step + 1
    out_dim = weight.shape[-1]
    assert weight.shape[0] % num_matrices == 0
    feat = weight.shape[0] // num_matrices

    n_pad = _round_up(num_nodes, 16)      # bf16 sublane tile
    f_pad = _round_up(feat, 128)
    o_pad = _round_up(out_dim, 128)

    # supports -> (S, Np, Np) bf16, zero-padded.
    sup_p = (jnp.zeros((num_supports, n_pad, n_pad), jnp.float32)
             .at[:, :num_nodes, :num_nodes].set(supports.astype(jnp.float32))
             .astype(jnp.bfloat16))

    # torch weight row index is f*M + m; kernel xstack columns are m*Fp + f,
    # so reorganize to (M, F, O), zero-pad, flatten.
    w3 = (weight.astype(jnp.float32)
          .reshape(feat, num_matrices, out_dim).transpose(1, 0, 2))
    w_p = (jnp.zeros((num_matrices, f_pad, o_pad), jnp.float32)
           .at[:, :feat, :out_dim].set(w3)
           .reshape(num_matrices * f_pad, o_pad)
           .astype(jnp.bfloat16))

    b_p = jnp.zeros((1, o_pad), jnp.float32).at[0, :out_dim].set(
        biases.astype(jnp.float32))

    return dict(sup_p=sup_p, w_p=w_p, b_p=b_p, feat=feat, out_dim=out_dim,
                num_supports=num_supports, num_matrices=num_matrices,
                n_pad=n_pad, f_pad=f_pad, o_pad=o_pad)


def diffusion_graph_conv(supports, inputs, state, weight, biases, *, num_nodes,
                         max_diffusion_step, batch_block=8,
                         projection_mode="auto", prepared=None):
    """Pallas implementation of DiffusionGraphConv.forward.

    supports: (S, N, N) f32 (dense view of the sparse supports)
    inputs  : (B, N * input_dim) f32
    state   : (B, N * hid_dim)  f32
    weight  : (F * M, O) f32, F = input_dim + hid_dim, M = S*K + 1
    biases  : (O,) f32
    returns : (B, N * O) f32
    """
    assert max_diffusion_step >= 1
    if prepared is None:
        prepared = prepare_diffusion_gconv_params(
            supports, weight, biases, num_nodes=num_nodes,
            max_diffusion_step=max_diffusion_step)

    batch = inputs.shape[0]
    n = num_nodes
    feat = prepared["feat"]
    out_dim = prepared["out_dim"]
    num_supports = prepared["num_supports"]
    num_matrices = prepared["num_matrices"]
    n_pad, f_pad, o_pad = prepared["n_pad"], prepared["f_pad"], prepared["o_pad"]
    sup_p, w_p, b_p = prepared["sup_p"], prepared["w_p"], prepared["b_p"]

    # --- VMEM-aware batch block + projection-path selection -----------------
    cap = _vmem_capacity_bytes()
    budget = int(cap * 0.70)              # leave headroom for compiler scratch
    tb = max(1, min(batch_block, batch))
    while tb > 1 and _estimate_vmem_bytes(tb, n_pad, f_pad, o_pad, num_supports,
                                          num_matrices, fused=False) > budget:
        tb = max(1, tb // 2)
    if projection_mode == "auto":
        fused = _estimate_vmem_bytes(tb, n_pad, f_pad, o_pad, num_supports,
                                     num_matrices, fused=True) <= budget
    elif projection_mode == "fused":
        fused = True
    elif projection_mode == "per_order":
        fused = False
    else:
        raise ValueError(projection_mode)
    b_pad = _round_up(batch, tb)

    est = _estimate_vmem_bytes(tb, n_pad, f_pad, o_pad, num_supports,
                               num_matrices, fused)
    vmem_limit = min(max(est + (16 << 20), 32 << 20), int(cap * 0.85))

    # --- input relayout: cast to bf16 BEFORE the pad/transpose/reshape ------
    x_in = inputs.reshape(batch, n, -1)
    h = state.reshape(batch, n, -1)
    x0 = jnp.concatenate([x_in, h], axis=2).astype(jnp.bfloat16)   # (B, N, F)
    assert x0.shape[-1] == feat
    x0_p = (jnp.zeros((b_pad, n_pad, f_pad), jnp.bfloat16)
            .at[:batch, :n, :feat].set(x0))
    x0_wide = x0_p.transpose(1, 0, 2).reshape(n_pad, b_pad * f_pad)

    kernel = functools.partial(
        _diffusion_gconv_kernel,
        num_supports=num_supports,
        max_diffusion_step=max_diffusion_step,
        batch_block=tb,
        n_pad=n_pad,
        f_pad=f_pad,
        fused_projection=fused,
    )

    if fused:
        scratch_shapes = [
            pltpu.VMEM((tb * n_pad, num_matrices * f_pad), jnp.bfloat16)]
    else:
        scratch_shapes = [
            pltpu.VMEM((tb * n_pad, f_pad), jnp.bfloat16),
            pltpu.VMEM((tb * n_pad, o_pad), jnp.float32)]

    def build_call(single_buffer):
        def inv_spec(shape):
            # Grid-invariant operand: single-buffer it when supported.
            idx = lambda b: tuple(0 for _ in shape)
            if single_buffer:
                return pl.BlockSpec(shape, idx, pipeline_mode=pl.Buffered(1))
            return pl.BlockSpec(shape, idx)

        return pl.pallas_call(
            kernel,
            out_shape=jax.ShapeDtypeStruct((b_pad * n_pad, o_pad), jnp.float32),
            grid_spec=pltpu.PrefetchScalarGridSpec(
                num_scalar_prefetch=0,
                grid=(b_pad // tb,),
                in_specs=[
                    inv_spec((num_supports, n_pad, n_pad)),
                    pl.BlockSpec((n_pad, tb * f_pad), lambda b: (0, b)),
                    inv_spec((num_matrices * f_pad, o_pad)),
                    inv_spec((1, o_pad)),
                ],
                out_specs=pl.BlockSpec((tb * n_pad, o_pad), lambda b: (b, 0)),
                scratch_shapes=scratch_shapes,
            ),
            compiler_params=pltpu.CompilerParams(
                dimension_semantics=("parallel",),
                vmem_limit_bytes=int(vmem_limit),
            ),
        )

    try:
        out = build_call(single_buffer=True)(sup_p, x0_wide, w_p, b_p)
    except Exception:
        # Fallback for JAX builds that reject pipeline_mode=pl.Buffered(1);
        # only costs one extra copy of the grid-invariant operands in VMEM.
        out = build_call(single_buffer=False)(sup_p, x0_wide, w_p, b_p)

    # Strip padding and flatten to (B, N * O) like the torch module.
    out = out.reshape(b_pad, n_pad, o_pad)[:batch, :n, :out_dim]
    return out.reshape(batch, n * out_dim)


# ---------------------------------------------------------------------------
# References
# ---------------------------------------------------------------------------
def _reference_f32(supports, inputs, state, weight, biases,
                   *, num_nodes, max_diffusion_step):
    """Plain-JAX f32 port of the torch forward (dense supports)."""
    hp = jax.lax.Precision.HIGHEST
    batch = inputs.shape[0]
    x_in = inputs.reshape(batch, num_nodes, -1)
    h = state.reshape(batch, num_nodes, -1)
    x0 = jnp.concatenate([x_in, h], axis=2)
    xs = [x0]
    for s in range(supports.shape[0]):
        sup = supports[s]
        x1 = jnp.einsum("nm,bmf->bnf", sup, x0, precision=hp)
        xs.append(x1)
        xkm2, xkm1 = x0, x1
        for _ in range(2, max_diffusion_step + 1):
            x2 = 2.0 * jnp.einsum("nm,bmf->bnf", sup, xkm1, precision=hp) - xkm2
            xs.append(x2)
            xkm2, xkm1 = xkm1, x2
    x = jnp.stack(xs, axis=1)                                        # (B,M,N,F)
    x = jnp.transpose(x, (0, 2, 3, 1)).reshape(batch * num_nodes, -1)
    y = jnp.dot(x, weight, precision=hp) + biases
    return y.reshape(batch, -1)


def _reference_bf16(supports, inputs, state, weight, biases,
                    *, num_nodes, max_diffusion_step):
    """Reference mimicking the kernel's bf16 MXU operands / f32 accumulation."""
    rb = lambda a: a.astype(jnp.bfloat16).astype(jnp.float32)
    hp = jax.lax.Precision.HIGHEST
    batch = inputs.shape[0]
    x_in = inputs.reshape(batch, num_nodes, -1)
    h = state.reshape(batch, num_nodes, -1)
    x0 = rb(jnp.concatenate([x_in, h], axis=2))
    sup_q = rb(supports)
    w_q = rb(weight)
    xs = [x0]
    for s in range(supports.shape[0]):
        a_s = sup_q[s]
        x_prev = x0
        x_cur = jnp.einsum("nm,bmf->bnf", a_s, x0, precision=hp)
        xs.append(rb(x_cur))
        for _ in range(2, max_diffusion_step + 1):
            x_new = 2.0 * jnp.einsum("nm,bmf->bnf", a_s, rb(x_cur),
                                     precision=hp) - x_prev
            xs.append(rb(x_new))
            x_prev, x_cur = x_cur, x_new
    x = jnp.stack(xs, axis=1)
    x = jnp.transpose(x, (0, 2, 3, 1)).reshape(batch * num_nodes, -1)
    y = jnp.dot(x, w_q, precision=hp) + biases
    return y.reshape(batch, -1)


if __name__ == "__main__":
    # Small, deterministic problem (N deliberately not a multiple of 16 to
    # exercise the padding path; batch_block=2 -> 2 grid steps).
    batch = 4
    num_nodes = 19
    input_dim = 4
    hid_dim = 8
    num_supports = 2
    max_diffusion_step = 2
    output_dim = 16

    feat = input_dim + hid_dim
    num_matrices = num_supports * max_diffusion_step + 1

    key = jax.random.PRNGKey(0)
    k_sup, k_in, k_st, k_w = jax.random.split(key, 4)

    # Dense "supports": row-normalized random non-negative matrices.
    raw = jax.random.uniform(k_sup, (num_supports, num_nodes, num_nodes),
                             dtype=jnp.float32)
    supports = raw / jnp.sum(raw, axis=-1, keepdims=True)

    inputs = jax.random.normal(k_in, (batch, num_nodes * input_dim),
                               dtype=jnp.float32)
    state = jax.random.normal(k_st, (batch, num_nodes * hid_dim),
                              dtype=jnp.float32)

    # Parameters (deterministic): xavier_uniform_ weight, zero bias.
    fan_in = feat * num_matrices
    bound = (6.0 / (fan_in + output_dim)) ** 0.5
    weight = jax.random.uniform(k_w, (fan_in, output_dim), dtype=jnp.float32,
                                minval=-bound, maxval=bound)
    biases = jnp.zeros((output_dim,), dtype=jnp.float32)

    # Hoisted (per-RNN-step-invariant) relayout of supports / weight / bias.
    prepared = prepare_diffusion_gconv_params(
        supports, weight, biases, num_nodes=num_nodes,
        max_diffusion_step=max_diffusion_step)

    ref_q = _reference_bf16(supports, inputs, state, weight, biases,
                            num_nodes=num_nodes,
                            max_diffusion_step=max_diffusion_step)
    ref_f = _reference_f32(supports, inputs, state, weight, biases,
                           num_nodes=num_nodes,
                           max_diffusion_step=max_diffusion_step)

    # Exercise both projection paths (fused big-K dot and per-order accumulate).
    for mode in ("fused", "per_order"):
        out = diffusion_graph_conv(supports, inputs, state, weight, biases,
                                   num_nodes=num_nodes,
                                   max_diffusion_step=max_diffusion_step,
                                   batch_block=2,
                                   projection_mode=mode,
                                   prepared=prepared)
        out = jax.block_until_ready(out)
        assert out.shape == (batch, num_nodes * output_dim), (mode, out.shape)
        err_q = float(jnp.max(jnp.abs(out - ref_q)))   # vs bf16-operand ref
        err_f = float(jnp.max(jnp.abs(out - ref_f)))   # vs pure-f32 ref
        assert err_q < 1e-2, (mode, err_q, err_f)
        assert err_f < 0.5, (mode, err_q, err_f)

    print("KERNEL_OK")
</pallas_src>

<mosaic_0001>
module attributes {stable_mosaic.version = 11 : i64} {
  func.func @_diffusion_gconv_kernel(%arg0: i32, %arg1: memref<2x32x32xbf16, #tpu.memory_space<vmem>>, %arg2: memref<32x256xbf16, #tpu.memory_space<vmem>>, %arg3: memref<640x128xbf16, #tpu.memory_space<vmem>>, %arg4: memref<1x128xf32, #tpu.memory_space<vmem>>, %arg5: memref<64x128xf32, #tpu.memory_space<vmem>>, %arg6: memref<64x640xbf16, #tpu.memory_space<vmem>>) attributes {dimension_semantics = [#tpu.dimension_semantics<parallel>], iteration_bounds = array<i64: 2>, scalar_prefetch = 0 : i64, scratch_operands = 1 : i64, tpu.core_type = #tpu.core_type<tc>, window_params = [{pipeline_mode = #tpu.pipeline_mode<synchronous>, transform_indices = @transform_0, window_bounds = array<i64: 2, 32, 32>}, {transform_indices = @transform_1, window_bounds = array<i64: 32, 256>}, {pipeline_mode = #tpu.pipeline_mode<synchronous>, transform_indices = @transform_2, window_bounds = array<i64: 640, 128>}, {pipeline_mode = #tpu.pipeline_mode<synchronous>, transform_indices = @transform_3, window_bounds = array<i64: 1, 128>}, {transform_indices = @transform_4, window_bounds = array<i64: 64, 128>}]} {
    %c0 = arith.constant 0 : index
    %c0_0 = arith.constant 0 : index
    %0 = vector.load %arg2[%c0, %c0_0] : memref<32x256xbf16, #tpu.memory_space<vmem>>, vector<32x256xbf16>
    %1 = vector.extract_strided_slice %0 {offsets = [0, 0], sizes = [32, 128], strides = [1, 1]} : vector<32x256xbf16> to vector<32x128xbf16>
    %c0_1 = arith.constant 0 : index
    %c0_2 = arith.constant 0 : index
    %2 = vector.load %arg6[%c0_1, %c0_2] : memref<64x640xbf16, #tpu.memory_space<vmem>>, vector<32x128xbf16>
    tpu.vector_store %arg6[%c0_1, %c0_2], %1 {strides = array<i32>} : memref<64x640xbf16, #tpu.memory_space<vmem>>, vector<32x128xbf16>,
    %3 = vector.extract_strided_slice %0 {offsets = [0, 128], sizes = [32, 128], strides = [1, 1]} : vector<32x256xbf16> to vector<32x128xbf16>
    %c32 = arith.constant 32 : index
    %c0_3 = arith.constant 0 : index
    %4 = vector.load %arg6[%c32, %c0_3] : memref<64x640xbf16, #tpu.memory_space<vmem>>, vector<32x128xbf16>
    tpu.vector_store %arg6[%c32, %c0_3], %3 {strides = array<i32>} : memref<64x640xbf16, #tpu.memory_space<vmem>>, vector<32x128xbf16>,
    %c0_4 = arith.constant 0 : index
    %c0_5 = arith.constant 0 : index
    %c0_6 = arith.constant 0 : index
    %5 = vector.load %arg1[%c0_4, %c0_5, %c0_6] : memref<2x32x32xbf16, #tpu.memory_space<vmem>>, vector<1x32x32xbf16>
    %6 = vector.shape_cast %5 : vector<1x32x32xbf16> to vector<32x32xbf16>
    %7 = arith.extf %0 : vector<32x256xbf16> to vector<32x256xf32>
    %cst = arith.constant dense<0.000000e+00> : vector<32x256xf32>
    %8 = tpu.matmul %6, %0, %cst {dimension_numbers = #tpu.dot_dimension_numbers<[1], [0], [0], [1], [0, 0, 1, 1], [], []>} : vector<32x32xbf16>, vector<32x256xbf16>, vector<32x256xf32> -> vector<32x256xf32>
    %9 = arith.truncf %8 : vector<32x256xf32> to vector<32x256xbf16>
    %10 = vector.extract_strided_slice %9 {offsets = [0, 0], sizes = [32, 128], strides = [1, 1]} : vector<32x256xbf16> to vector<32x128xbf16>
    %c0_7 = arith.constant 0 : index
    %c128 = arith.constant 128 : index
    %11 = vector.load %arg6[%c0_7, %c128] : memref<64x640xbf16, #tpu.memory_space<vmem>>, vector<32x128xbf16>
    tpu.vector_store %arg6[%c0_7, %c128], %10 {strides = array<i32>} : memref<64x640xbf16, #tpu.memory_space<vmem>>, vector<32x128xbf16>,
    %12 = vector.extract_strided_slice %9 {offsets = [0, 128], sizes = [32, 128], strides = [1, 1]} : vector<32x256xbf16> to vector<32x128xbf16>
    %c32_8 = arith.constant 32 : index
    %c128_9 = arith.constant 128 : index
    %13 = vector.load %arg6[%c32_8, %c128_9] : memref<64x640xbf16, #tpu.memory_space<vmem>>, vector<32x128xbf16>
    tpu.vector_store %arg6[%c32_8, %c128_9], %12 {strides = array<i32>} : memref<64x640xbf16, #tpu.memory_space<vmem>>, vector<32x128xbf16>,
    %cst_10 = arith.constant dense<0.000000e+00> : vector<32x256xf32>
    %14 = tpu.matmul %6, %9, %cst_10 {dimension_numbers = #tpu.dot_dimension_numbers<[1], [0], [0], [1], [0, 0, 1, 1], [], []>} : vector<32x32xbf16>, vector<32x256xbf16>, vector<32x256xf32> -> vector<32x256xf32>
    %cst_11 = arith.constant 2.000000e+00 : f32
    %15 = vector.broadcast %cst_11 : f32 to vector<32x256xf32>
    %16 = arith.mulf %15, %14 : vector<32x256xf32>
    %17 = arith.subf %16, %7 : vector<32x256xf32>
    %18 = arith.truncf %17 : vector<32x256xf32> to vector<32x256xbf16>
    %19 = vector.extract_strided_slice %18 {offsets = [0, 0], sizes = [32, 128], strides = [1, 1]} : vector<32x256xbf16> to vector<32x128xbf16>
    %c0_12 = arith.constant 0 : index
    %c256 = arith.constant 256 : index
    %20 = vector.load %arg6[%c0_12, %c256] : memref<64x640xbf16, #tpu.memory_space<vmem>>, vector<32x128xbf16>
    tpu.vector_store %arg6[%c0_12, %c256], %19 {strides = array<i32>} : memref<64x640xbf16, #tpu.memory_space<vmem>>, vector<32x128xbf16>,
    %21 = vector.extract_strided_slice %18 {offsets = [0, 128], sizes = [32, 128], strides = [1, 1]} : vector<32x256xbf16> to vector<32x128xbf16>
    %c32_13 = arith.constant 32 : index
    %c256_14 = arith.constant 256 : index
    %22 = vector.load %arg6[%c32_13, %c256_14] : memref<64x640xbf16, #tpu.memory_space<vmem>>, vector<32x128xbf16>
    tpu.vector_store %arg6[%c32_13, %c256_14], %21 {strides = array<i32>} : memref<64x640xbf16, #tpu.memory_space<vmem>>, vector<32x128xbf16>,
    %c1 = arith.constant 1 : index
    %c0_15 = arith.constant 0 : index
    %c0_16 = arith.constant 0 : index
    %23 = vector.load %arg1[%c1, %c0_15, %c0_16] : memref<2x32x32xbf16, #tpu.memory_space<vmem>>, vector<1x32x32xbf16>
    %24 = vector.shape_cast %23 : vector<1x32x32xbf16> to vector<32x32xbf16>
    %25 = arith.extf %0 : vector<32x256xbf16> to vector<32x256xf32>
    %cst_17 = arith.constant dense<0.000000e+00> : vector<32x256xf32>
    %26 = tpu.matmul %24, %0, %cst_17 {dimension_numbers = #tpu.dot_dimension_numbers<[1], [0], [0], [1], [0, 0, 1, 1], [], []>} : vector<32x32xbf16>, vector<32x256xbf16>, vector<32x256xf32> -> vector<32x256xf32>
    %27 = arith.truncf %26 : vector<32x256xf32> to vector<32x256xbf16>
    %28 = vector.extract_strided_slice %27 {offsets = [0, 0], sizes = [32, 128], strides = [1, 1]} : vector<32x256xbf16> to vector<32x128xbf16>
    %c0_18 = arith.constant 0 : index
    %c384 = arith.constant 384 : index
    %29 = vector.load %arg6[%c0_18, %c384] : memref<64x640xbf16, #tpu.memory_space<vmem>>, vector<32x128xbf16>
    tpu.vector_store %arg6[%c0_18, %c384], %28 {strides = array<i32>} : memref<64x640xbf16, #tpu.memory_space<vmem>>, vector<32x128xbf16>,
    %30 = vector.extract_strided_slice %27 {offsets = [0, 128], sizes = [32, 128], strides = [1, 1]} : vector<32x256xbf16> to vector<32x128xbf16>
    %c32_19 = arith.constant 32 : index
    %c384_20 = arith.constant 384 : index
    %31 = vector.load %arg6[%c32_19, %c384_20] : memref<64x640xbf16, #tpu.memory_space<vmem>>, vector<32x128xbf16>
    tpu.vector_store %arg6[%c32_19, %c384_20], %30 {strides = array<i32>} : memref<64x640xbf16, #tpu.memory_space<vmem>>, vector<32x128xbf16>,
    %cst_21 = arith.constant dense<0.000000e+00> : vector<32x256xf32>
    %32 = tpu.matmul %24, %27, %cst_21 {dimension_numbers = #tpu.dot_dimension_numbers<[1], [0], [0], [1], [0, 0, 1, 1], [], []>} : vector<32x32xbf16>, vector<32x256xbf16>, vector<32x256xf32> -> vector<32x256xf32>
    %cst_22 = arith.constant 2.000000e+00 : f32
    %33 = vector.broadcast %cst_22 : f32 to vector<32x256xf32>
    %34 = arith.mulf %33, %32 : vector<32x256xf32>
    %35 = arith.subf %34, %25 : vector<32x256xf32>
    %36 = arith.truncf %35 : vector<32x256xf32> to vector<32x256xbf16>
    %37 = vector.extract_strided_slice %36 {offsets = [0, 0], sizes = [32, 128], strides = [1, 1]} : vector<32x256xbf16> to vector<32x128xbf16>
    %c0_23 = arith.constant 0 : index
    %c512 = arith.constant 512 : index
    %38 = vector.load %arg6[%c0_23, %c512] : memref<64x640xbf16, #tpu.memory_space<vmem>>, vector<32x128xbf16>
    tpu.vector_store %arg6[%c0_23, %c512], %37 {strides = array<i32>} : memref<64x640xbf16, #tpu.memory_space<vmem>>, vector<32x128xbf16>,
    %39 = vector.extract_strided_slice %36 {offsets = [0, 128], sizes = [32, 128], strides = [1, 1]} : vector<32x256xbf16> to vector<32x128xbf16>
    %c32_24 = arith.constant 32 : index
    %c512_25 = arith.constant 512 : index
    %40 = vector.load %arg6[%c32_24, %c512_25] : memref<64x640xbf16, #tpu.memory_space<vmem>>, vector<32x128xbf16>
    tpu.vector_store %arg6[%c32_24, %c512_25], %39 {strides = array<i32>} : memref<64x640xbf16, #tpu.memory_space<vmem>>, vector<32x128xbf16>,
    %c0_26 = arith.constant 0 : index
    %c0_27 = arith.constant 0 : index
    %41 = vector.load %arg6[%c0_26, %c0_27] : memref<64x640xbf16, #tpu.memory_space<vmem>>, vector<64x640xbf16>
    %c0_28 = arith.constant 0 : index
    %c0_29 = arith.constant 0 : index
    %42 = vector.load %arg3[%c0_28, %c0_29] : memref<640x128xbf16, #tpu.memory_space<vmem>>, vector<640x128xbf16>
    %cst_30 = arith.constant dense<0.000000e+00> : vector<64x128xf32>
    %43 = tpu.matmul %41, %42, %cst_30 {dimension_numbers = #tpu.dot_dimension_numbers<[1], [0], [0], [1], [0, 0, 1, 1], [], []>} : vector<64x640xbf16>, vector<640x128xbf16>, vector<64x128xf32> -> vector<64x128xf32>
    %c0_31 = arith.constant 0 : index
    %c0_32 = arith.constant 0 : index
    %44 = vector.load %arg4[%c0_31, %c0_32] : memref<1x128xf32, #tpu.memory_space<vmem>>, vector<1x128xf32>
    %45 = vector.broadcast %44 : vector<1x128xf32> to vector<64x128xf32>
    %46 = arith.addf %43, %45 : vector<64x128xf32>
    %c0_33 = arith.constant 0 : index
    %c0_34 = arith.constant 0 : index
    %47 = vector.load %arg5[%c0_33, %c0_34] : memref<64x128xf32, #tpu.memory_space<vmem>>, vector<64x128xf32>
    tpu.vector_store %arg5[%c0_33, %c0_34], %46 {strides = array<i32>} : memref<64x128xf32, #tpu.memory_space<vmem>>, vector<64x128xf32>,
    return
  }
  func.func @transform_0(%arg0: i32) -> (i32, i32, i32) {
    %c0_i32 = arith.constant 0 : i32
    %c0_i32_0 = arith.constant 0 : i32
    %c0_i32_1 = arith.constant 0 : i32
    %c0_i32_2 = arith.constant 0 : i32
    return %c0_i32, %c0_i32_0, %c0_i32_1 : i32, i32, i32
  }
  func.func @transform_1(%arg0: i32) -> (i32, i32) {
    %c0_i32 = arith.constant 0 : i32
    %c0_i32_0 = arith.constant 0 : i32
    return %c0_i32, %arg0 : i32, i32
  }
  func.func @transform_2(%arg0: i32) -> (i32, i32) {
    %c0_i32 = arith.constant 0 : i32
    %c0_i32_0 = arith.constant 0 : i32
    %c0_i32_1 = arith.constant 0 : i32
    return %c0_i32, %c0_i32_0 : i32, i32
  }
  func.func @transform_3(%arg0: i32) -> (i32, i32) {
    %c0_i32 = arith.constant 0 : i32
    %c0_i32_0 = arith.constant 0 : i32
    %c0_i32_1 = arith.constant 0 : i32
    return %c0_i32, %c0_i32_0 : i32, i32
  }
  func.func @transform_4(%arg0: i32) -> (i32, i32) {
    %c0_i32 = arith.constant 0 : i32
    %c0_i32_0 = arith.constant 0 : i32
    return %arg0, %c0_i32 : i32, i32
  }
}

module attributes {stable_mosaic.version = 11 : i64} {
  func.func @_diffusion_gconv_kernel(%arg0: i32, %arg1: memref<2x32x32xbf16, #tpu.memory_space<vmem>>, %arg2: memref<32x256xbf16, #tpu.memory_space<vmem>>, %arg3: memref<640x128xbf16, #tpu.memory_space<vmem>>, %arg4: memref<1x128xf32, #tpu.memory_space<vmem>>, %arg5: memref<64x128xf32, #tpu.memory_space<vmem>>, %arg6: memref<64x640xbf16, #tpu.memory_space<vmem>>) attributes {dimension_semantics = [#tpu.dimension_semantics<parallel>], iteration_bounds = array<i64: 2>, scalar_prefetch = 0 : i64, scratch_operands = 1 : i64, tpu.core_type = #tpu.core_type<tc>, window_params = [{pipeline_mode = #tpu.pipeline_mode<synchronous>, transform_indices = @transform_0, window_bounds = array<i64: 2, 32, 32>}, {transform_indices = @transform_1, window_bounds = array<i64: 32, 256>}, {pipeline_mode = #tpu.pipeline_mode<synchronous>, transform_indices = @transform_2, window_bounds = array<i64: 640, 128>}, {pipeline_mode = #tpu.pipeline_mode<synchronous>, transform_indices = @transform_3, window_bounds = array<i64: 1, 128>}, {transform_indices = @transform_4, window_bounds = array<i64: 64, 128>}]} {
    %c0 = arith.constant 0 : index
    %c0_0 = arith.constant 0 : index
    %0 = vector.load %arg2[%c0, %c0_0] : memref<32x256xbf16, #tpu.memory_space<vmem>>, vector<32x256xbf16>
    %1 = vector.extract_strided_slice %0 {offsets = [0, 0], sizes = [32, 128], strides = [1, 1]} : vector<32x256xbf16> to vector<32x128xbf16>
    %c0_1 = arith.constant 0 : index
    %c0_2 = arith.constant 0 : index
    %2 = vector.load %arg6[%c0_1, %c0_2] : memref<64x640xbf16, #tpu.memory_space<vmem>>, vector<32x128xbf16>
    tpu.vector_store %arg6[%c0_1, %c0_2], %1 {strides = array<i32>} : memref<64x640xbf16, #tpu.memory_space<vmem>>, vector<32x128xbf16>,
    %3 = vector.extract_strided_slice %0 {offsets = [0, 128], sizes = [32, 128], strides = [1, 1]} : vector<32x256xbf16> to vector<32x128xbf16>
    %c32 = arith.constant 32 : index
    %c0_3 = arith.constant 0 : index
    %4 = vector.load %arg6[%c32, %c0_3] : memref<64x640xbf16, #tpu.memory_space<vmem>>, vector<32x128xbf16>
    tpu.vector_store %arg6[%c32, %c0_3], %3 {strides = array<i32>} : memref<64x640xbf16, #tpu.memory_space<vmem>>, vector<32x128xbf16>,
    %c0_4 = arith.constant 0 : index
    %c0_5 = arith.constant 0 : index
    %c0_6 = arith.constant 0 : index
    %5 = vector.load %arg1[%c0_4, %c0_5, %c0_6] : memref<2x32x32xbf16, #tpu.memory_space<vmem>>, vector<1x32x32xbf16>
    %6 = vector.shape_cast %5 : vector<1x32x32xbf16> to vector<32x32xbf16>
    %7 = arith.extf %0 : vector<32x256xbf16> to vector<32x256xf32>
    %cst = arith.constant dense<0.000000e+00> : vector<32x256xf32>
    %8 = tpu.matmul %6, %0, %cst {dimension_numbers = #tpu.dot_dimension_numbers<[1], [0], [0], [1], [0, 0, 1, 1], [], []>} : vector<32x32xbf16>, vector<32x256xbf16>, vector<32x256xf32> -> vector<32x256xf32>
    %9 = arith.truncf %8 : vector<32x256xf32> to vector<32x256xbf16>
    %10 = vector.extract_strided_slice %9 {offsets = [0, 0], sizes = [32, 128], strides = [1, 1]} : vector<32x256xbf16> to vector<32x128xbf16>
    %c0_7 = arith.constant 0 : index
    %c128 = arith.constant 128 : index
    %11 = vector.load %arg6[%c0_7, %c128] : memref<64x640xbf16, #tpu.memory_space<vmem>>, vector<32x128xbf16>
    tpu.vector_store %arg6[%c0_7, %c128], %10 {strides = array<i32>} : memref<64x640xbf16, #tpu.memory_space<vmem>>, vector<32x128xbf16>,
    %12 = vector.extract_strided_slice %9 {offsets = [0, 128], sizes = [32, 128], strides = [1, 1]} : vector<32x256xbf16> to vector<32x128xbf16>
    %c32_8 = arith.constant 32 : index
    %c128_9 = arith.constant 128 : index
    %13 = vector.load %arg6[%c32_8, %c128_9] : memref<64x640xbf16, #tpu.memory_space<vmem>>, vector<32x128xbf16>
    tpu.vector_store %arg6[%c32_8, %c128_9], %12 {strides = array<i32>} : memref<64x640xbf16, #tpu.memory_space<vmem>>, vector<32x128xbf16>,
    %cst_10 = arith.constant dense<0.000000e+00> : vector<32x256xf32>
    %14 = tpu.matmul %6, %9, %cst_10 {dimension_numbers = #tpu.dot_dimension_numbers<[1], [0], [0], [1], [0, 0, 1, 1], [], []>} : vector<32x32xbf16>, vector<32x256xbf16>, vector<32x256xf32> -> vector<32x256xf32>
    %cst_11 = arith.constant 2.000000e+00 : f32
    %15 = vector.broadcast %cst_11 : f32 to vector<32x256xf32>
    %16 = arith.mulf %15, %14 : vector<32x256xf32>
    %17 = arith.subf %16, %7 : vector<32x256xf32>
    %18 = arith.truncf %17 : vector<32x256xf32> to vector<32x256xbf16>
    %19 = vector.extract_strided_slice %18 {offsets = [0, 0], sizes = [32, 128], strides = [1, 1]} : vector<32x256xbf16> to vector<32x128xbf16>
    %c0_12 = arith.constant 0 : index
    %c256 = arith.constant 256 : index
    %20 = vector.load %arg6[%c0_12, %c256] : memref<64x640xbf16, #tpu.memory_space<vmem>>, vector<32x128xbf16>
    tpu.vector_store %arg6[%c0_12, %c256], %19 {strides = array<i32>} : memref<64x640xbf16, #tpu.memory_space<vmem>>, vector<32x128xbf16>,
    %21 = vector.extract_strided_slice %18 {offsets = [0, 128], sizes = [32, 128], strides = [1, 1]} : vector<32x256xbf16> to vector<32x128xbf16>
    %c32_13 = arith.constant 32 : index
    %c256_14 = arith.constant 256 : index
    %22 = vector.load %arg6[%c32_13, %c256_14] : memref<64x640xbf16, #tpu.memory_space<vmem>>, vector<32x128xbf16>
    tpu.vector_store %arg6[%c32_13, %c256_14], %21 {strides = array<i32>} : memref<64x640xbf16, #tpu.memory_space<vmem>>, vector<32x128xbf16>,
    %c1 = arith.constant 1 : index
    %c0_15 = arith.constant 0 : index
    %c0_16 = arith.constant 0 : index
    %23 = vector.load %arg1[%c1, %c0_15, %c0_16] : memref<2x32x32xbf16, #tpu.memory_space<vmem>>, vector<1x32x32xbf16>
    %24 = vector.shape_cast %23 : vector<1x32x32xbf16> to vector<32x32xbf16>
    %25 = arith.extf %0 : vector<32x256xbf16> to vector<32x256xf32>
    %cst_17 = arith.constant dense<0.000000e+00> : vector<32x256xf32>
    %26 = tpu.matmul %24, %0, %cst_17 {dimension_numbers = #tpu.dot_dimension_numbers<[1], [0], [0], [1], [0, 0, 1, 1], [], []>} : vector<32x32xbf16>, vector<32x256xbf16>, vector<32x256xf32> -> vector<32x256xf32>
    %27 = arith.truncf %26 : vector<32x256xf32> to vector<32x256xbf16>
    %28 = vector.extract_strided_slice %27 {offsets = [0, 0], sizes = [32, 128], strides = [1, 1]} : vector<32x256xbf16> to vector<32x128xbf16>
    %c0_18 = arith.constant 0 : index
    %c384 = arith.constant 384 : index
    %29 = vector.load %arg6[%c0_18, %c384] : memref<64x640xbf16, #tpu.memory_space<vmem>>, vector<32x128xbf16>
    tpu.vector_store %arg6[%c0_18, %c384], %28 {strides = array<i32>} : memref<64x640xbf16, #tpu.memory_space<vmem>>, vector<32x128xbf16>,
    %30 = vector.extract_strided_slice %27 {offsets = [0, 128], sizes = [32, 128], strides = [1, 1]} : vector<32x256xbf16> to vector<32x128xbf16>
    %c32_19 = arith.constant 32 : index
    %c384_20 = arith.constant 384 : index
    %31 = vector.load %arg6[%c32_19, %c384_20] : memref<64x640xbf16, #tpu.memory_space<vmem>>, vector<32x128xbf16>
    tpu.vector_store %arg6[%c32_19, %c384_20], %30 {strides = array<i32>} : memref<64x640xbf16, #tpu.memory_space<vmem>>, vector<32x128xbf16>,
    %cst_21 = arith.constant dense<0.000000e+00> : vector<32x256xf32>
    %32 = tpu.matmul %24, %27, %cst_21 {dimension_numbers = #tpu.dot_dimension_numbers<[1], [0], [0], [1], [0, 0, 1, 1], [], []>} : vector<32x32xbf16>, vector<32x256xbf16>, vector<32x256xf32> -> vector<32x256xf32>
    %cst_22 = arith.constant 2.000000e+00 : f32
    %33 = vector.broadcast %cst_22 : f32 to vector<32x256xf32>
    %34 = arith.mulf %33, %32 : vector<32x256xf32>
    %35 = arith.subf %34, %25 : vector<32x256xf32>
    %36 = arith.truncf %35 : vector<32x256xf32> to vector<32x256xbf16>
    %37 = vector.extract_strided_slice %36 {offsets = [0, 0], sizes = [32, 128], strides = [1, 1]} : vector<32x256xbf16> to vector<32x128xbf16>
    %c0_23 = arith.constant 0 : index
    %c512 = arith.constant 512 : index
    %38 = vector.load %arg6[%c0_23, %c512] : memref<64x640xbf16, #tpu.memory_space<vmem>>, vector<32x128xbf16>
    tpu.vector_store %arg6[%c0_23, %c512], %37 {strides = array<i32>} : memref<64x640xbf16, #tpu.memory_space<vmem>>, vector<32x128xbf16>,
    %39 = vector.extract_strided_slice %36 {offsets = [0, 128], sizes = [32, 128], strides = [1, 1]} : vector<32x256xbf16> to vector<32x128xbf16>
    %c32_24 = arith.constant 32 : index
    %c512_25 = arith.constant 512 : index
    %40 = vector.load %arg6[%c32_24, %c512_25] : memref<64x640xbf16, #tpu.memory_space<vmem>>, vector<32x128xbf16>
    tpu.vector_store %arg6[%c32_24, %c512_25], %39 {strides = array<i32>} : memref<64x640xbf16, #tpu.memory_space<vmem>>, vector<32x128xbf16>,
    %c0_26 = arith.constant 0 : index
    %c0_27 = arith.constant 0 : index
    %41 = vector.load %arg6[%c0_26, %c0_27] : memref<64x640xbf16, #tpu.memory_space<vmem>>, vector<64x640xbf16>
    %c0_28 = arith.constant 0 : index
    %c0_29 = arith.constant 0 : index
    %42 = vector.load %arg3[%c0_28, %c0_29] : memref<640x128xbf16, #tpu.memory_space<vmem>>, vector<640x128xbf16>
    %cst_30 = arith.constant dense<0.000000e+00> : vector<64x128xf32>
    %43 = tpu.matmul %41, %42, %cst_30 {dimension_numbers = #tpu.dot_dimension_numbers<[1], [0], [0], [1], [0, 0, 1, 1], [], []>} : vector<64x640xbf16>, vector<640x128xbf16>, vector<64x128xf32> -> vector<64x128xf32>
    %c0_31 = arith.constant 0 : index
    %c0_32 = arith.constant 0 : index
    %44 = vector.load %arg4[%c0_31, %c0_32] : memref<1x128xf32, #tpu.memory_space<vmem>>, vector<1x128xf32>
    %45 = vector.broadcast %44 : vector<1x128xf32> to vector<64x128xf32>
    %46 = arith.addf %43, %45 : vector<64x128xf32>
    %c0_33 = arith.constant 0 : index
    %c0_34 = arith.constant 0 : index
    %47 = vector.load %arg5[%c0_33, %c0_34] : memref<64x128xf32, #tpu.memory_space<vmem>>, vector<64x128xf32>
    tpu.vector_store %arg5[%c0_33, %c0_34], %46 {strides = array<i32>} : memref<64x128xf32, #tpu.memory_space<vmem>>, vector<64x128xf32>,
    return
  }
  func.func @transform_0(%arg0: i32) -> (i32, i32, i32) {
    %c0_i32 = arith.constant 0 : i32
    %c0_i32_0 = arith.constant 0 : i32
    %c0_i32_1 = arith.constant 0 : i32
    %c0_i32_2 = arith.constant 0 : i32
    return %c0_i32, %c0_i32_0, %c0_i32_1 : i32, i32, i32
  }
  func.func @transform_1(%arg0: i32) -> (i32, i32) {
    %c0_i32 = arith.constant 0 : i32
    %c0_i32_0 = arith.constant 0 : i32
    return %c0_i32, %arg0 : i32, i32
  }
  func.func @transform_2(%arg0: i32) -> (i32, i32) {
    %c0_i32 = arith.constant 0 : i32
    %c0_i32_0 = arith.constant 0 : i32
    %c0_i32_1 = arith.constant 0 : i32
    return %c0_i32, %c0_i32_0 : i32, i32
  }
  func.func @transform_3(%arg0: i32) -> (i32, i32) {
    %c0_i32 = arith.constant 0 : i32
    %c0_i32_0 = arith.constant 0 : i32
    %c0_i32_1 = arith.constant 0 : i32
    return %c0_i32, %c0_i32_0 : i32, i32
  }
  func.func @transform_4(%arg0: i32) -> (i32, i32) {
    %c0_i32 = arith.constant 0 : i32
    %c0_i32_0 = arith.constant 0 : i32
    return %arg0, %c0_i32 : i32, i32
  }
}

</mosaic_0001>

<llo_original>
// kernel: tpu_custom_call.1
$region0: #{tpu_custom_call.1}
  #allocation0 [shape = 'u32[]', space=smem, size = 0x4, offset = 0x4, fixed_abs, tag = 'smem constant byte address 0x4 - core index']
  #allocation1 [shape = 'u32[144,128]{1,0:T(1,128)}', space=vmem, size = 0x12000, scoped, tag = 'internal scratch']
  #allocation2 [shape = 'bf16[64,640]{1,0:T(16,128)(2,1)}', space=vmem, size = 0x14000, scoped, tag = 'scratch operand']
  %s0 = inlined_call_operand.hbm [shape: bf16[2,32,32], index: 0, kind: input, shape index: {}]
  %s1 = inlined_call_operand.hbm [shape: bf16[32,512], index: 1, kind: input, shape index: {}]
  %s2 = inlined_call_operand.hbm [shape: bf16[640,128], index: 2, kind: input, shape index: {}]
  %s3 = inlined_call_operand.vmem [shape: f32[1,128], index: 3, kind: input, shape index: {}]
  %s4 = inlined_call_operand.hbm [shape: f32[128,128], index: 4, kind: output, shape index: {}]
  %s5 = sld [smem:[#allocation0]]
  $region61: #{tpu_custom_call.1} parent=0
    _
  %s7 = ssub.s32 1, %s5
  %s8 = scalar_select 0, %s7, %s5
  $region1: #{tpu_custom_call.1} parent=0
    #allocation3 [shape = 'u8[16384]{0}', space=vmem, size = 0x4000, scoped, tag = 'input window, operand 0, single buffered']
    #allocation4 [shape = 's32[2]{0}', space=sflag, size = 0x8, scoped, tag = 'scoped memory for tpu_custom_call.1']
    #allocation5 [shape = 's32[2]{0}', space=sflag, size = 0x8, scoped, tag = 'scoped memory for tpu_custom_call.1']
    #allocation6 [shape = 'u8[32768]{0}', space=vmem, size = 0x8000, scoped, tag = 'input window, operand 1']
    #allocation7 [shape = 's32[2]{0}', space=sflag, size = 0x8, scoped, tag = 'scoped memory for tpu_custom_call.1']
    #allocation8 [shape = 'u8[163840]{0}', space=vmem, size = 0x28000, scoped, tag = 'input window, operand 2, single buffered']
    #allocation9 [shape = 'u8[65536]{0}', space=vmem, size = 0x10000, scoped, tag = 'output window, operand 0']
    %9 = vsyncpa [#allocation4], 0
    %10 = vsyncpa [#allocation7], 0
    %s11 = scalar_lea.sflag [#allocation7], 1
    %12 = vsyncpa %s11, 0
    %13 = vsyncpa [#allocation5], 0
    %s14 = scalar_lea.sflag [#allocation5], 1
    %15 = vsyncpa %s14, 0
    loop: start=0, step=1, limit=4
    $region2: #{tpu_custom_call.1} parent=1 // loop_pre_header
      _
    $region3: #{tpu_custom_call.1} parent=1 // loop_header
      %s17 = sphi 0, %s21
      %p18 = scmp.ge.s32.totalorder %s17, 4
      %s25 = sphi 0, %s25
      %s27 = sphi 0, %s25
      %s28 = sphi 0, %s27
      %s42 = sphi 0, %s28
      %s48 = sphi 0, %s50
      %s51 = sphi 0, %s48
      %s52 = sphi 0, %s51
      %s68 = sphi 0, %s52
      %s72 = sphi 0, %s72
      %s74 = sphi 0, %s72
      %s75 = sphi 0, %s74
      %s89 = sphi 0, %s75
      %s93 = sphi 0, %s93
      %s95 = sphi 0, %s93
      %s96 = sphi 0, %s95
      %s110 = sphi 0, %s96
      %s116 = sphi 0, %s118
      %s119 = sphi 0, %s116
      %s120 = sphi 0, %s119
      %s136 = sphi 0, %s120
    $region4: #{tpu_custom_call.1} parent=1 // loop_header_branch
      %20 = sbr.rel (%p18) target = $region8
    $region5: #{tpu_custom_call.1} parent=1 // loop_body
      %s22 = ssub.s32 %s17, 1
      %s23 = ssub.s32 %s17, 2
      %s24 = sadd.s32 %s17, 1
      %s26 = sadd.s32 %s25, 1
      %p29 = scmp.eq.s32.totalorder %s17, 1
      %p30 = scmp.ne.s32.totalorder %s25, %s27
      %p31 = scmp.eq.s32.totalorder %s17, 0
      %p32 = por %p30, %p31
      %p33 = scmp.ne.s32.totalorder %s25, %s27
      %p34 = scmp.eq.s32.totalorder %s22, 1
      %p35 = por %p33, %p34
      %p36 = scmp.ne.s32.totalorder %s27, %s28
      %p37 = scmp.eq.s32.totalorder %s22, 0
      %p38 = por %p36, %p37
      %p39 = scmp.ne.s32.totalorder %s27, %s28
      %p40 = scmp.eq.s32.totalorder %s23, 1
      %p41 = por %p39, %p40
      %p43 = scmp.ne.s32.totalorder %s28, %s42
      %p44 = scmp.eq.s32.totalorder %s23, 0
      %p45 = por %p43, %p44
      %s46 = ssub.s32 %s17, %s24
      %p47 = scmp.eq.s32.totalorder %s46, 0
      %s49 = sadd.s32 %s48, 1
      %s50 = scalar_select %p47, %s48, %s49
      %p53 = pneg %p47
      %p54 = scmp.eq.s32.totalorder %s17, 1
      %p55 = por %p53, %p54
      %p56 = scmp.ne.s32.totalorder %s48, %s51
      %p57 = scmp.eq.s32.totalorder %s17, 0
      %p58 = por %p56, %p57
      %p59 = scmp.ne.s32.totalorder %s48, %s51
      %p60 = scmp.eq.s32.totalorder %s22, 1
      %p61 = por %p59, %p60
      %p62 = scmp.ne.s32.totalorder %s51, %s52
      %p63 = scmp.eq.s32.totalorder %s22, 0
      %p64 = por %p62, %p63
      %p65 = scmp.ne.s32.totalorder %s51, %s52
      %p66 = scmp.eq.s32.totalorder %s23, 1
      %p67 = por %p65, %p66
      %p69 = scmp.ne.s32.totalorder %s52, %s68
      %p70 = scmp.eq.s32.totalorder %s23, 0
      %p71 = por %p69, %p70
      %s73 = sadd.s32 %s72, 1
      %p76 = scmp.eq.s32.totalorder %s17, 1
      %p77 = scmp.ne.s32.totalorder %s72, %s74
      %p78 = scmp.eq.s32.totalorder %s17, 0
      %p79 = por %p77, %p78
      %p80 = scmp.ne.s32.totalorder %s72, %s74
      %p81 = scmp.eq.s32.totalorder %s22, 1
      %p82 = por %p80, %p81
      %p83 = scmp.ne.s32.totalorder %s74, %s75
      %p84 = scmp.eq.s32.totalorder %s22, 0
      %p85 = por %p83, %p84
      %p86 = scmp.ne.s32.totalorder %s74, %s75
      %p87 = scmp.eq.s32.totalorder %s23, 1
      %p88 = por %p86, %p87
      %p90 = scmp.ne.s32.totalorder %s75, %s89
      %p91 = scmp.eq.s32.totalorder %s23, 0
      %p92 = por %p90, %p91
      %s94 = sadd.s32 %s93, 1
      %p97 = scmp.eq.s32.totalorder %s17, 1
      %p98 = scmp.ne.s32.totalorder %s93, %s95
      %p99 = scmp.eq.s32.totalorder %s17, 0
      %p100 = por %p98, %p99
      %p101 = scmp.ne.s32.totalorder %s93, %s95
      %p102 = scmp.eq.s32.totalorder %s22, 1
      %p103 = por %p101, %p102
      %p104 = scmp.ne.s32.totalorder %s95, %s96
      %p105 = scmp.eq.s32.totalorder %s22, 0
      %p106 = por %p104, %p105
      %p107 = scmp.ne.s32.totalorder %s95, %s96
      %p108 = scmp.eq.s32.totalorder %s23, 1
      %p109 = por %p107, %p108
      %p111 = scmp.ne.s32.totalorder %s96, %s110
      %p112 = scmp.eq.s32.totalorder %s23, 0
      %p113 = por %p111, %p112
      %s114 = ssub.s32 %s17, %s24
      %p115 = scmp.eq.s32.totalorder %s114, 0
      %s117 = sadd.s32 %s116, 1
      %s118 = scalar_select %p115, %s116, %s117
      %p121 = pneg %p115
      %p122 = scmp.eq.s32.totalorder %s17, 1
      %p123 = por %p121, %p122
      %p124 = scmp.ne.s32.totalorder %s116, %s119
      %p125 = scmp.eq.s32.totalorder %s17, 0
      %p126 = por %p124, %p125
      %p127 = scmp.ne.s32.totalorder %s116, %s119
      %p128 = scmp.eq.s32.totalorder %s22, 1
      %p129 = por %p127, %p128
      %p130 = scmp.ne.s32.totalorder %s119, %s120
      %p131 = scmp.eq.s32.totalorder %s22, 0
      %p132 = por %p130, %p131
      %p133 = scmp.ne.s32.totalorder %s119, %s120
      %p134 = scmp.eq.s32.totalorder %s23, 1
      %p135 = por %p133, %p134
      %p137 = scmp.ne.s32.totalorder %s120, %s136
      %p138 = scmp.eq.s32.totalorder %s23, 0
      %p139 = por %p137, %p138
      %p140 = scmp.le.s32.totalorder 1, %s17
      %p141 = scmp.lt.s32.totalorder %s17, 3
      %p142 = pnand %p140, %p141
      %p143 = pneg %p142
      // Predicated region
      $region9: #{tpu_custom_call.1} parent=5 // pred_check
        _
      $region10: #{tpu_custom_call.1} parent=5 // pred_check_branch
        %145 = sbr.rel (%p142) target = $region12
      $region11: #{tpu_custom_call.1} parent=5 // pred_region
        %s146 = ssub.s32 %s17, 1
        // Predicated region
        $region13: #{tpu_custom_call.1} parent=11 // pred_check
          %p147 = pneg %p38
        $region14: #{tpu_custom_call.1} parent=11 // pred_check_branch
          %149 = sbr.rel (%p147) target = $region16
        $region15: #{tpu_custom_call.1} parent=11 // pred_region
          %s151 = ssub.s32 512, 512
          %152 = vsyncadd [#allocation4], %s151
          %s153 = sshll.u32 [#allocation3], 4
          %s154 = int_to_ptr.vmem [resolvable:$true] %s153
          %159 = dma.hbm_to_vmem [thread:$0]  %s0, 512, %s154, [#allocation4], 64, 64, 4
        $region16: #{tpu_custom_call.1} parent=11 // pred_fallthru
          _
        // Predicated region
        $region17: #{tpu_custom_call.1} parent=11 // pred_check
          %p160 = pneg %p85
        $region18: #{tpu_custom_call.1} parent=11 // pred_check_branch
          %162 = sbr.rel (%p160) target = $region20
        $region19: #{tpu_custom_call.1} parent=11 // pred_region
          %s164 = ssub.s32 5120, 5120
          %165 = vsyncadd [#allocation7], %s164
          %s166 = sshll.u32 [#allocation8], 4
          %s167 = int_to_ptr.vmem [resolvable:$true] %s166
          %172 = dma.hbm_to_vmem [thread:$0]  %s2, 5120, %s167, [#allocation7], 64, 64, 4
        $region20: #{tpu_custom_call.1} parent=11 // pred_fallthru
          _
        // Predicated region
        $region21: #{tpu_custom_call.1} parent=11 // pred_check
          %p173 = pneg %p106
        $region22: #{tpu_custom_call.1} parent=11 // pred_check_branch
          %175 = sbr.rel (%p173) target = $region24
        $region23: #{tpu_custom_call.1} parent=11 // pred_region
          _
        $region24: #{tpu_custom_call.1} parent=11 // pred_fallthru
          _
      $region12: #{tpu_custom_call.1} parent=5 // pred_fallthru
        _
      %p176 = scmp.lt.s32.totalorder %s17, 2
      // Predicated region
      $region25: #{tpu_custom_call.1} parent=5 // pred_check
        %p177 = pneg %p176
      $region26: #{tpu_custom_call.1} parent=5 // pred_check_branch
        %179 = sbr.rel (%p177) target = $region28
      $region27: #{tpu_custom_call.1} parent=5 // pred_region
        // Predicated region
        $region29: #{tpu_custom_call.1} parent=27 // pred_check
          %p180 = pneg %p58
        $region30: #{tpu_custom_call.1} parent=27 // pred_check_branch
          %182 = sbr.rel (%p180) target = $region32
        $region31: #{tpu_custom_call.1} parent=27 // pred_region
          %s183 = sand.u32 %s17, 1
          %s184 = scalar_lea.sflag [#allocation7], %s183
          %s185 = sand.u32 %s48, 1
          %s186 = smul.addr %s185, 32
          %s187 = scalar_lea.vmem [#allocation6], %s186
          %s188 = smul.u32 2, %s17
          %s190 = ssub.s32 512, 512
          %191 = vsyncadd %s184, %s190
          %s192 = smul.addr %s188, 64
          %s193 = scalar_lea.hbm %s1, %s192
          %s194 = sshll.u32 %s187, 4
          %s195 = int_to_ptr.vmem [resolvable:$true] %s194
          %200 = dma.hbm_to_vmem [thread:$0]  %s193, 512, %s195, %s184, 256, 128, 8
        $region32: #{tpu_custom_call.1} parent=27 // pred_fallthru
          _
      $region28: #{tpu_custom_call.1} parent=5 // pred_fallthru
        _
      %p201 = scmp.le.s32.totalorder 1, %s17
      %p202 = scmp.lt.s32.totalorder %s17, 3
      %p203 = pnand %p201, %p202
      %p204 = pneg %p203
      // Predicated region
      $region33: #{tpu_custom_call.1} parent=5 // pred_check
        _
      $region34: #{tpu_custom_call.1} parent=5 // pred_check_branch
        %206 = sbr.rel (%p203) target = $region36
      $region35: #{tpu_custom_call.1} parent=5 // pred_region
        %s207 = ssub.s32 %s17, 1
        // Predicated region
        $region37: #{tpu_custom_call.1} parent=35 // pred_check
          %p208 = pneg %p38
        $region38: #{tpu_custom_call.1} parent=35 // pred_check_branch
          %210 = sbr.rel (%p208) target = $region40
        $region39: #{tpu_custom_call.1} parent=35 // pred_region
          %211 = dma.done [#allocation4], 512
        $region40: #{tpu_custom_call.1} parent=35 // pred_fallthru
          _
        %s212 = sand.u32 %s22, 1
        %s213 = scalar_lea.sflag [#allocation7], %s212
        %s214 = sand.u32 %s51, 1
        %s215 = smul.addr %s214, 32
        %s216 = scalar_lea.vmem [#allocation6], %s215
        // Predicated region
        $region41: #{tpu_custom_call.1} parent=35 // pred_check
          %p217 = pneg %p64
        $region42: #{tpu_custom_call.1} parent=35 // pred_check_branch
          %219 = sbr.rel (%p217) target = $region44
        $region43: #{tpu_custom_call.1} parent=35 // pred_region
          %220 = dma.done %s213, 512
        $region44: #{tpu_custom_call.1} parent=35 // pred_fallthru
          _
        // Predicated region
        $region45: #{tpu_custom_call.1} parent=35 // pred_check
          %p221 = pneg %p85
        $region46: #{tpu_custom_call.1} parent=35 // pred_check_branch
          %223 = sbr.rel (%p221) target = $region48
        $region47: #{tpu_custom_call.1} parent=35 // pred_region
          %224 = dma.done [#allocation7], 5120
        $region48: #{tpu_custom_call.1} parent=35 // pred_fallthru
          _
        %p225 = pneg %p38
        %p226 = pneg %p35
        %s227 = sand.u32 %s22, 1
        %s228 = scalar_lea.sflag [#allocation7], %s227
        %s229 = sand.u32 %s51, 1
        %s230 = smul.addr %s229, 32
        %s231 = scalar_lea.vmem [#allocation6], %s230
        %p232 = pneg %p64
        %p233 = pneg %p61
        %p234 = pneg %p85
        %p235 = pneg %p82
        %p236 = pneg %p106
        %p237 = pneg %p103
        %p238 = pneg %p132
        %p239 = pneg %p129
        %s240 = sand.u32 %s119, 1
        %s241 = scalar_lea.sflag [#allocation5], %s240
        %s242 = sand.u32 %s119, 1
        %s243 = smul.addr %s242, 64
        %s244 = scalar_lea.vmem [#allocation9], %s243
        %s245 = smul.u32 2, %s22
        %s246 = smul.u32 8, %s22
        %v248 = vld [vmem:[%s216] sm:$0xff]
        %v249 = vld [vmem:[%s216 + $0x8] sm:$0xff]
        %v250 = vld [vmem:[%s216 + $0x10] sm:$0xff]
        %v251 = vld [vmem:[%s216 + $0x18] sm:$0xff]
        %v256 = vunpack.c.l.b16 %v248
        %v257 = vunpack.c.l.b16 %v249
        %v258 = vunpack.c.l.b16 %v250
        %v259 = vunpack.c.l.b16 %v251
        %v260 = vpack.c.b16 %v257, %v256
        %v261 = vpack.c.b16 %v259, %v258
        %264 = vst [vmem:[#allocation2] sm:$0xff] %v260
        %265 = vst [vmem:[#allocation2 + $0x28] sm:$0xff] %v261
        %v266 = vunpack.c.h.b16 %v248
        %v267 = vunpack.c.h.b16 %v249
        %v268 = vunpack.c.h.b16 %v250
        %v269 = vunpack.c.h.b16 %v251
        %v270 = vpack.c.b16 %v267, %v266
        %v271 = vpack.c.b16 %v269, %v268
        %274 = vst [vmem:[#allocation2 + $0x50] sm:$0xff] %v270
        %275 = vst [vmem:[#allocation2 + $0x78] sm:$0xff] %v271
        %v276 = vld [vmem:[#allocation3] sm:$0xf]
        %v277 = vld [vmem:[#allocation3 + $0x4] sm:$0xf]
        %v278 = vld [vmem:[#allocation3 + $0x8] sm:$0xf]
        %v279 = vld [vmem:[#allocation3 + $0xc] sm:$0xf]
        %v280 = vunpack.c.l.bf16 %v248
        %v281 = vunpack.c.h.bf16 %v248
        %v282 = vunpack.c.l.bf16 %v249
        %v283 = vunpack.c.h.bf16 %v249
        %v284 = vunpack.c.l.bf16 %v250
        %v285 = vunpack.c.h.bf16 %v250
        %v286 = vunpack.c.l.bf16 %v251
        %v287 = vunpack.c.h.bf16 %v251
        %v292 = vunpack.c.l.b16 %v276
        %v293 = vunpack.c.l.b16 %v277
        %v294 = vunpack.c.l.b16 %v278
        %v295 = vunpack.c.l.b16 %v279
        %v296 = vpack.c.b16 %v293, %v292
        %v297 = vpack.c.b16 %v295, %v294
        %vm298 = vcmask 261120
        %v300 = vsel %vm298, %v296, 0
        %v303 = vsel %vm298, %v297, 0
        %305 = vmatprep.subr.bf16.mxu0 %v270
        %306 = vmatpush1.bf16.msra.mxu0 %v260
        %307 = vmatprep.subr.bf16.mxu0 %v271
        %308 = vmatpush1.bf16.msra.mxu0 %v261
        %309 = vmatprep.subr.bf16.mxu0 0
        %310 = vmatpush1.bf16.msra.mxu0 0
        %311 = vmatprep.subr.bf16.mxu0 0
        %312 = vmatpush1.bf16.msra.mxu0 0
        %313 = vmatprep.subr.bf16.mxu0 0
        %314 = vmatpush1.bf16.msra.mxu0 0
        %315 = vmatprep.subr.bf16.mxu0 0
        %316 = vmatpush1.bf16.msra.mxu0 0
        %317 = vmatprep.subr.bf16.mxu0 0
        %318 = vmatpush1.bf16.msra.mxu0 0
        %319 = vmatprep.subr.bf16.mxu0 0
        %320 = vmatpush1.bf16.msra.mxu0 0
        %321 = vmatprep.subr.bf16.mxu0 0
        %322 = vmatpush1.bf16.msra.mxu0 0
        %323 = vmatprep.subr.bf16.mxu0 0
        %324 = vmatpush1.bf16.msra.mxu0 0
        %325 = vmatprep.subr.bf16.mxu0 0
        %326 = vmatpush1.bf16.msra.mxu0 0
        %327 = vmatprep.subr.bf16.mxu0 0
        %328 = vmatpush1.bf16.msra.mxu0 0
        %329 = vmatprep.subr.bf16.mxu0 0
        %330 = vmatpush1.bf16.msra.mxu0 0
        %331 = vmatprep.subr.bf16.mxu0 0
        %332 = vmatpush1.bf16.msra.mxu0 0
        %333 = vmatprep.subr.bf16.mxu0 0
        %334 = vmatpush1.bf16.msra.mxu0 0
        %335 = vmatprep.subr.bf16.mxu0 0
        %336 = vmatpush1.bf16.msra.mxu0 0
        %337 = vmatprep.mubr.bf16.mxu0 0
        %338 = vmatmul.mubr.bf16.gmra.mrb[0].mxu0 %v300
        %v339 = vpop.f32.mrb[0].mxu0
        %v340 = vadd.f32 0.0, %v339
        %v341 = vpop.f32.mrb[0].mxu0
        %v342 = vadd.f32 0.0, %v341
        %v343 = vpop.f32.mrb[0].mxu0
        %v344 = vadd.f32 0.0, %v343
        %v345 = vpop.f32.mrb[0].mxu0
        %v346 = vadd.f32 0.0, %v345
        %347 = vmatprep.mubr.bf16.mxu0 0
        %348 = vmatmul.mubr.bf16.gmra.mrb[0].mxu0 %v303
        %v349 = vpop.f32.mrb[0].mxu0
        %v350 = vadd.f32 0.0, %v349
        %v351 = vpop.f32.mrb[0].mxu0
        %v352 = vadd.f32 0.0, %v351
        %v353 = vpop.f32.mrb[0].mxu0
        %v354 = vadd.f32 0.0, %v353
        %v355 = vpop.f32.mrb[0].mxu0
        %v356 = vadd.f32 0.0, %v355
        %357 = vdwg.mxu0
        %v358 = vpack.c.bf16 %v344, %v340
        %v359 = vpack.c.bf16 %v346, %v342
        %v360 = vpack.c.bf16 %v354, %v350
        %v361 = vpack.c.bf16 %v356, %v352
        %362 = vst [vmem:[#allocation2 + $0x8] sm:$0xff] %v358
        %363 = vst [vmem:[#allocation2 + $0x30] sm:$0xff] %v360
        %364 = vst [vmem:[#allocation2 + $0x58] sm:$0xff] %v359
        %365 = vst [vmem:[#allocation2 + $0x80] sm:$0xff] %v361
        %366 = vmatprep.subr.bf16.mxu0 %v359
        %367 = vmatpush1.bf16.msra.mxu0 %v358
        %368 = vmatprep.subr.bf16.mxu0 %v361
        %369 = vmatpush1.bf16.msra.mxu0 %v360
        %370 = vmatprep.subr.bf16.mxu0 0
        %371 = vmatpush1.bf16.msra.mxu0 0
        %372 = vmatprep.subr.bf16.mxu0 0
        %373 = vmatpush1.bf16.msra.mxu0 0
        %374 = vmatprep.subr.bf16.mxu0 0
        %375 = vmatpush1.bf16.msra.mxu0 0
        %376 = vmatprep.subr.bf16.mxu0 0
        %377 = vmatpush1.bf16.msra.mxu0 0
        %378 = vmatprep.subr.bf16.mxu0 0
        %379 = vmatpush1.bf16.msra.mxu0 0
        %380 = vmatprep.subr.bf16.mxu0 0
        %381 = vmatpush1.bf16.msra.mxu0 0
        %382 = vmatprep.subr.bf16.mxu0 0
        %383 = vmatpush1.bf16.msra.mxu0 0
        %384 = vmatprep.subr.bf16.mxu0 0
        %385 = vmatpush1.bf16.msra.mxu0 0
        %386 = vmatprep.subr.bf16.mxu0 0
        %387 = vmatpush1.bf16.msra.mxu0 0
        %388 = vmatprep.subr.bf16.mxu0 0
        %389 = vmatpush1.bf16.msra.mxu0 0
        %390 = vmatprep.subr.bf16.mxu0 0
        %391 = vmatpush1.bf16.msra.mxu0 0
        %392 = vmatprep.subr.bf16.mxu0 0
        %393 = vmatpush1.bf16.msra.mxu0 0
        %394 = vmatprep.subr.bf16.mxu0 0
        %395 = vmatpush1.bf16.msra.mxu0 0
        %396 = vmatprep.subr.bf16.mxu0 0
        %397 = vmatpush1.bf16.msra.mxu0 0
        %398 = vmatprep.mubr.bf16.mxu0 0
        %399 = vmatmul.mubr.bf16.gmra.mrb[0].mxu0 %v300
        %v400 = vpop.f32.mrb[0].mxu0
        %v401 = vadd.f32 0.0, %v400
        %v402 = vpop.f32.mrb[0].mxu0
        %v403 = vadd.f32 0.0, %v402
        %v404 = vpop.f32.mrb[0].mxu0
        %v405 = vadd.f32 0.0, %v404
        %v406 = vpop.f32.mrb[0].mxu0
        %v407 = vadd.f32 0.0, %v406
        %408 = vmatprep.mubr.bf16.mxu0 0
        %409 = vmatmul.mubr.bf16.gmra.mrb[0].mxu0 %v303
        %v410 = vpop.f32.mrb[0].mxu0
        %v411 = vadd.f32 0.0, %v410
        %v412 = vpop.f32.mrb[0].mxu0
        %v413 = vadd.f32 0.0, %v412
        %v414 = vpop.f32.mrb[0].mxu0
        %v415 = vadd.f32 0.0, %v414
        %v416 = vpop.f32.mrb[0].mxu0
        %v417 = vadd.f32 0.0, %v416
        %418 = vdwg.mxu0
        %v419 = vmul.f32 %v401, 2.0
        %v420 = vmul.f32 %v403, 2.0
        %v421 = vmul.f32 %v405, 2.0
        %v422 = vmul.f32 %v407, 2.0
        %v423 = vmul.f32 %v411, 2.0
        %v424 = vmul.f32 %v413, 2.0
        %v425 = vmul.f32 %v415, 2.0
        %v426 = vmul.f32 %v417, 2.0
        %v427 = vsub.f32 %v419, %v280
        %v428 = vsub.f32 %v420, %v281
        %v429 = vsub.f32 %v421, %v282
        %v430 = vsub.f32 %v422, %v283
        %v431 = vsub.f32 %v423, %v284
        %v432 = vsub.f32 %v424, %v285
        %v433 = vsub.f32 %v425, %v286
        %v434 = vsub.f32 %v426, %v287
        %v435 = vpack.c.bf16 %v429, %v427
        %v436 = vpack.c.bf16 %v430, %v428
        %v437 = vpack.c.bf16 %v433, %v431
        %v438 = vpack.c.bf16 %v434, %v432
        %439 = vst [vmem:[#allocation2 + $0x10] sm:$0xff] %v435
        %440 = vst [vmem:[#allocation2 + $0x38] sm:$0xff] %v437
        %441 = vst [vmem:[#allocation2 + $0x60] sm:$0xff] %v436
        %442 = vst [vmem:[#allocation2 + $0x88] sm:$0xff] %v438
        %s443 = scalar_lea.vmem [#allocation3], 16
        %v444 = vld [vmem:[%s443] sm:$0xf]
        %v445 = vld [vmem:[%s443 + $0x4] sm:$0xf]
        %v446 = vld [vmem:[%s443 + $0x8] sm:$0xf]
        %v447 = vld [vmem:[%s443 + $0xc] sm:$0xf]
        %v452 = vunpack.c.l.b16 %v444
        %v453 = vunpack.c.l.b16 %v445
        %v454 = vunpack.c.l.b16 %v446
        %v455 = vunpack.c.l.b16 %v447
        %v456 = vpack.c.b16 %v453, %v452
        %v457 = vpack.c.b16 %v455, %v454
        %v459 = vsel %vm298, %v456, 0
        %v462 = vsel %vm298, %v457, 0
        %464 = vmatprep.subr.bf16.mxu0 %v270
        %465 = vmatpush1.bf16.msra.mxu0 %v260
        %466 = vmatprep.subr.bf16.mxu0 %v271
        %467 = vmatpush1.bf16.msra.mxu0 %v261
        %468 = vmatprep.subr.bf16.mxu0 0
        %469 = vmatpush1.bf16.msra.mxu0 0
        %470 = vmatprep.subr.bf16.mxu0 0
        %471 = vmatpush1.bf16.msra.mxu0 0
        %472 = vmatprep.subr.bf16.mxu0 0
        %473 = vmatpush1.bf16.msra.mxu0 0
        %474 = vmatprep.subr.bf16.mxu0 0
        %475 = vmatpush1.bf16.msra.mxu0 0
        %476 = vmatprep.subr.bf16.mxu0 0
        %477 = vmatpush1.bf16.msra.mxu0 0
        %478 = vmatprep.subr.bf16.mxu0 0
        %479 = vmatpush1.bf16.msra.mxu0 0
        %480 = vmatprep.subr.bf16.mxu0 0
        %481 = vmatpush1.bf16.msra.mxu0 0
        %482 = vmatprep.subr.bf16.mxu0 0
        %483 = vmatpush1.bf16.msra.mxu0 0
        %484 = vmatprep.subr.bf16.mxu0 0
        %485 = vmatpush1.bf16.msra.mxu0 0
        %486 = vmatprep.subr.bf16.mxu0 0
        %487 = vmatpush1.bf16.msra.mxu0 0
        %488 = vmatprep.subr.bf16.mxu0 0
        %489 = vmatpush1.bf16.msra.mxu0 0
        %490 = vmatprep.subr.bf16.mxu0 0
        %491 = vmatpush1.bf16.msra.mxu0 0
        %492 = vmatprep.subr.bf16.mxu0 0
        %493 = vmatpush1.bf16.msra.mxu0 0
        %494 = vmatprep.subr.bf16.mxu0 0
        %495 = vmatpush1.bf16.msra.mxu0 0
        %496 = vmatprep.mubr.bf16.mxu0 0
        %497 = vmatmul.mubr.bf16.gmra.mrb[0].mxu0 %v459
        %v498 = vpop.f32.mrb[0].mxu0
        %v499 = vadd.f32 0.0, %v498
        %v500 = vpop.f32.mrb[0].mxu0
        %v501 = vadd.f32 0.0, %v500
        %v502 = vpop.f32.mrb[0].mxu0
        %v503 = vadd.f32 0.0, %v502
        %v504 = vpop.f32.mrb[0].mxu0
        %v505 = vadd.f32 0.0, %v504
        %506 = vmatprep.mubr.bf16.mxu0 0
        %507 = vmatmul.mubr.bf16.gmra.mrb[0].mxu0 %v462
        %v508 = vpop.f32.mrb[0].mxu0
        %v509 = vadd.f32 0.0, %v508
        %v510 = vpop.f32.mrb[0].mxu0
        %v511 = vadd.f32 0.0, %v510
        %v512 = vpop.f32.mrb[0].mxu0
        %v513 = vadd.f32 0.0, %v512
        %v514 = vpop.f32.mrb[0].mxu0
        %v515 = vadd.f32 0.0, %v514
        %516 = vdwg.mxu0
        %v517 = vpack.c.bf16 %v503, %v499
        %v518 = vpack.c.bf16 %v505, %v501
        %v519 = vpack.c.bf16 %v513, %v509
        %v520 = vpack.c.bf16 %v515, %v511
        %521 = vst [vmem:[#allocation2 + $0x18] sm:$0xff] %v517
        %522 = vst [vmem:[#allocation2 + $0x40] sm:$0xff] %v519
        %523 = vst [vmem:[#allocation2 + $0x68] sm:$0xff] %v518
        %524 = vst [vmem:[#allocation2 + $0x90] sm:$0xff] %v520
        %525 = vmatprep.subr.bf16.mxu0 %v518
        %526 = vmatpush1.bf16.msra.mxu0 %v517
        %527 = vmatprep.subr.bf16.mxu0 %v520
        %528 = vmatpush1.bf16.msra.mxu0 %v519
        %529 = vmatprep.subr.bf16.mxu0 0
        %530 = vmatpush1.bf16.msra.mxu0 0
        %531 = vmatprep.subr.bf16.mxu0 0
        %532 = vmatpush1.bf16.msra.mxu0 0
        %533 = vmatprep.subr.bf16.mxu0 0
        %534 = vmatpush1.bf16.msra.mxu0 0
        %535 = vmatprep.subr.bf16.mxu0 0
        %536 = vmatpush1.bf16.msra.mxu0 0
        %537 = vmatprep.subr.bf16.mxu0 0
        %538 = vmatpush1.bf16.msra.mxu0 0
        %539 = vmatprep.subr.bf16.mxu0 0
        %540 = vmatpush1.bf16.msra.mxu0 0
        %541 = vmatprep.subr.bf16.mxu0 0
        %542 = vmatpush1.bf16.msra.mxu0 0
        %543 = vmatprep.subr.bf16.mxu0 0
        %544 = vmatpush1.bf16.msra.mxu0 0
        %545 = vmatprep.subr.bf16.mxu0 0
        %546 = vmatpush1.bf16.msra.mxu0 0
        %547 = vmatprep.subr.bf16.mxu0 0
        %548 = vmatpush1.bf16.msra.mxu0 0
        %549 = vmatprep.subr.bf16.mxu0 0
        %550 = vmatpush1.bf16.msra.mxu0 0
        %551 = vmatprep.subr.bf16.mxu0 0
        %552 = vmatpush1.bf16.msra.mxu0 0
        %553 = vmatprep.subr.bf16.mxu0 0
        %554 = vmatpush1.bf16.msra.mxu0 0
        %555 = vmatprep.subr.bf16.mxu0 0
        %556 = vmatpush1.bf16.msra.mxu0 0
        %557 = vmatprep.mubr.bf16.mxu0 0
        %558 = vmatmul.mubr.bf16.gmra.mrb[0].mxu0 %v459
        %v559 = vpop.f32.mrb[0].mxu0
        %v560 = vadd.f32 0.0, %v559
        %v561 = vpop.f32.mrb[0].mxu0
        %v562 = vadd.f32 0.0, %v561
        %v563 = vpop.f32.mrb[0].mxu0
        %v564 = vadd.f32 0.0, %v563
        %v565 = vpop.f32.mrb[0].mxu0
        %v566 = vadd.f32 0.0, %v565
        %567 = vmatprep.mubr.bf16.mxu0 0
        %568 = vmatmul.mubr.bf16.gmra.mrb[0].mxu0 %v462
        %v569 = vpop.f32.mrb[0].mxu0
        %v570 = vadd.f32 0.0, %v569
        %v571 = vpop.f32.mrb[0].mxu0
        %v572 = vadd.f32 0.0, %v571
        %v573 = vpop.f32.mrb[0].mxu0
        %v574 = vadd.f32 0.0, %v573
        %v575 = vpop.f32.mrb[0].mxu0
        %v576 = vadd.f32 0.0, %v575
        %577 = vdwg.mxu0
        %v578 = vmul.f32 %v560, 2.0
        %v579 = vmul.f32 %v562, 2.0
        %v580 = vmul.f32 %v564, 2.0
        %v581 = vmul.f32 %v566, 2.0
        %v582 = vmul.f32 %v570, 2.0
        %v583 = vmul.f32 %v572, 2.0
        %v584 = vmul.f32 %v574, 2.0
        %v585 = vmul.f32 %v576, 2.0
        %v586 = vsub.f32 %v578, %v280
        %v587 = vsub.f32 %v579, %v281
        %v588 = vsub.f32 %v580, %v282
        %v589 = vsub.f32 %v581, %v283
        %v590 = vsub.f32 %v582, %v284
        %v591 = vsub.f32 %v583, %v285
        %v592 = vsub.f32 %v584, %v286
        %v593 = vsub.f32 %v585, %v287
        %v594 = vpack.c.bf16 %v588, %v586
        %v595 = vpack.c.bf16 %v589, %v587
        %v596 = vpack.c.bf16 %v592, %v590
        %v597 = vpack.c.bf16 %v593, %v591
        %598 = vst [vmem:[#allocation2 + $0x20] sm:$0xff] %v594
        %599 = vst [vmem:[#allocation2 + $0x48] sm:$0xff] %v596
        %600 = vst [vmem:[#allocation2 + $0x70] sm:$0xff] %v595
        %601 = vst [vmem:[#allocation2 + $0x98] sm:$0xff] %v597
        %v602 = vld [vmem:[#allocation2] sm:$0xff]
        %v603 = vld [vmem:[#allocation2 + $0x8] sm:$0xff]
        %v604 = vld [vmem:[#allocation2 + $0x10] sm:$0xff]
        %v605 = vld [vmem:[#allocation2 + $0x18] sm:$0xff]
        %v606 = vld [vmem:[#allocation2 + $0x20] sm:$0xff]
        %v607 = vld [vmem:[#allocation2 + $0x28] sm:$0xff]
        %v608 = vld [vmem:[#allocation2 + $0x30] sm:$0xff]
        %v609 = vld [vmem:[#allocation2 + $0x38] sm:$0xff]
        %v610 = vld [vmem:[#allocation2 + $0x40] sm:$0xff]
        %v611 = vld [vmem:[#allocation2 + $0x48] sm:$0xff]
        %v612 = vld [vmem:[#allocation2 + $0x50] sm:$0xff]
        %v613 = vld [vmem:[#allocation2 + $0x58] sm:$0xff]
        %v614 = vld [vmem:[#allocation2 + $0x60] sm:$0xff]
        %v615 = vld [vmem:[#allocation2 + $0x68] sm:$0xff]
        %v616 = vld [vmem:[#allocation2 + $0x70] sm:$0xff]
        %v617 = vld [vmem:[#allocation2 + $0x78] sm:$0xff]
        %v618 = vld [vmem:[#allocation2 + $0x80] sm:$0xff]
        %v619 = vld [vmem:[#allocation2 + $0x88] sm:$0xff]
        %v620 = vld [vmem:[#allocation2 + $0x90] sm:$0xff]
        %v621 = vld [vmem:[#allocation2 + $0x98] sm:$0xff]
        %v622 = vld [vmem:[#allocation8] sm:$0xf]
        %v623 = vld [vmem:[#allocation8 + $0x4] sm:$0xf]
        %v624 = vld [vmem:[#allocation8 + $0x8] sm:$0xf]
        %v625 = vld [vmem:[#allocation8 + $0xc] sm:$0xf]
        %v626 = vld [vmem:[#allocation8 + $0x10] sm:$0xf]
        %v627 = vld [vmem:[#allocation8 + $0x14] sm:$0xf]
        %v628 = vld [vmem:[#allocation8 + $0x18] sm:$0xf]
        %v629 = vld [vmem:[#allocation8 + $0x1c] sm:$0xf]
        %v630 = vld [vmem:[#allocation8 + $0x20] sm:$0xf]
        %v631 = vld [vmem:[#allocation8 + $0x24] sm:$0xf]
        %v632 = vld [vmem:[#allocation8 + $0x28] sm:$0xf]
        %v633 = vld [vmem:[#allocation8 + $0x2c] sm:$0xf]
        %v634 = vld [vmem:[#allocation8 + $0x30] sm:$0xf]
        %v635 = vld [vmem:[#allocation8 + $0x34] sm:$0xf]
        %v636 = vld [vmem:[#allocation8 + $0x38] sm:$0xf]
        %v637 = vld [vmem:[#allocation8 + $0x3c] sm:$0xf]
        %v638 = vld [vmem:[#allocation8 + $0x40] sm:$0xf]
        %v639 = vld [vmem:[#allocation8 + $0x44] sm:$0xf]
        %v640 = vld [vmem:[#allocation8 + $0x48] sm:$0xf]
        %v641 = vld [vmem:[#allocation8 + $0x4c] sm:$0xf]
        %v642 = vld [vmem:[#allocation8 + $0x50] sm:$0xf]
        %v643 = vld [vmem:[#allocation8 + $0x54] sm:$0xf]
        %v644 = vld [vmem:[#allocation8 + $0x58] sm:$0xf]
        %v645 = vld [vmem:[#allocation8 + $0x5c] sm:$0xf]
        %v646 = vld [vmem:[#allocation8 + $0x60] sm:$0xf]
        %v647 = vld [vmem:[#allocation8 + $0x64] sm:$0xf]
        %v648 = vld [vmem:[#allocation8 + $0x68] sm:$0xf]
        %v649 = vld [vmem:[#allocation8 + $0x6c] sm:$0xf]
        %v650 = vld [vmem:[#allocation8 + $0x70] sm:$0xf]
        %v651 = vld [vmem:[#allocation8 + $0x74] sm:$0xf]
        %v652 = vld [vmem:[#allocation8 + $0x78] sm:$0xf]
        %v653 = vld [vmem:[#allocation8 + $0x7c] sm:$0xf]
        %v654 = vld [vmem:[#allocation8 + $0x80] sm:$0xf]
        %v655 = vld [vmem:[#allocation8 + $0x84] sm:$0xf]
        %v656 = vld [vmem:[#allocation8 + $0x88] sm:$0xf]
        %v657 = vld [vmem:[#allocation8 + $0x8c] sm:$0xf]
        %v658 = vld [vmem:[#allocation8 + $0x90] sm:$0xf]
        %v659 = vld [vmem:[#allocation8 + $0x94] sm:$0xf]
        %v660 = vld [vmem:[#allocation8 + $0x98] sm:$0xf]
        %v661 = vld [vmem:[#allocation8 + $0x9c] sm:$0xf]
        %v662 = vld [vmem:[#allocation8 + $0xa0] sm:$0xf]
        %v663 = vld [vmem:[#allocation8 + $0xa4] sm:$0xf]
        %v664 = vld [vmem:[#allocation8 + $0xa8] sm:$0xf]
        %v665 = vld [vmem:[#allocation8 + $0xac] sm:$0xf]
        %v666 = vld [vmem:[#allocation8 + $0xb0] sm:$0xf]
        %v667 = vld [vmem:[#allocation8 + $0xb4] sm:$0xf]
        %v668 = vld [vmem:[#allocation8 + $0xb8] sm:$0xf]
        %v669 = vld [vmem:[#allocation8 + $0xbc] sm:$0xf]
        %v670 = vld [vmem:[#allocation8 + $0xc0] sm:$0xf]
        %v671 = vld [vmem:[#allocation8 + $0xc4] sm:$0xf]
        %v672 = vld [vmem:[#allocation8 + $0xc8] sm:$0xf]
        %v673 = vld [vmem:[#allocation8 + $0xcc] sm:$0xf]
        %v674 = vld [vmem:[#allocation8 + $0xd0] sm:$0xf]
        %v675 = vld [vmem:[#allocation8 + $0xd4] sm:$0xf]
        %v676 = vld [vmem:[#allocation8 + $0xd8] sm:$0xf]
        %v677 = vld [vmem:[#allocation8 + $0xdc] sm:$0xf]
        %v678 = vld [vmem:[#allocation8 + $0xe0] sm:$0xf]
        %v679 = vld [vmem:[#allocation8 + $0xe4] sm:$0xf]
        %v680 = vld [vmem:[#allocation8 + $0xe8] sm:$0xf]
        %v681 = vld [vmem:[#allocation8 + $0xec] sm:$0xf]
        %v682 = vld [vmem:[#allocation8 + $0xf0] sm:$0xf]
        %v683 = vld [vmem:[#allocation8 + $0xf4] sm:$0xf]
        %v684 = vld [vmem:[#allocation8 + $0xf8] sm:$0xf]
        %v685 = vld [vmem:[#allocation8 + $0xfc] sm:$0xf]
        %v686 = vld [vmem:[#allocation8 + $0x100] sm:$0xf]
        %v687 = vld [vmem:[#allocation8 + $0x104] sm:$0xf]
        %v688 = vld [vmem:[#allocation8 + $0x108] sm:$0xf]
        %v689 = vld [vmem:[#allocation8 + $0x10c] sm:$0xf]
        %v690 = vld [vmem:[#allocation8 + $0x110] sm:$0xf]
        %v691 = vld [vmem:[#allocation8 + $0x114] sm:$0xf]
        %v692 = vld [vmem:[#allocation8 + $0x118] sm:$0xf]
        %v693 = vld [vmem:[#allocation8 + $0x11c] sm:$0xf]
        %v694 = vld [vmem:[#allocation8 + $0x120] sm:$0xf]
        %v695 = vld [vmem:[#allocation8 + $0x124] sm:$0xf]
        %v696 = vld [vmem:[#allocation8 + $0x128] sm:$0xf]
        %v697 = vld [vmem:[#allocation8 + $0x12c] sm:$0xf]
        %v698 = vld [vmem:[#allocation8 + $0x130] sm:$0xf]
        %v699 = vld [vmem:[#allocation8 + $0x134] sm:$0xf]
        %v700 = vld [vmem:[#allocation8 + $0x138] sm:$0xf]
        %v701 = vld [vmem:[#allocation8 + $0x13c] sm:$0xf]
        %v702 = vld [vmem:[%s3] sm:$0x1]
        %v704 = vlaneseq
        %v705 = vshrl.u32 %v704, 7
        %v706 = vsub.s32 0, %v705
        %v707 = vrot.slane %v702, %v706
        %v789 = vunpack.c.l.b16 %v622
        %v790 = vunpack.c.l.b16 %v623
        %v791 = vunpack.c.l.b16 %v624
        %v792 = vunpack.c.l.b16 %v625
        %v793 = vunpack.c.l.b16 %v626
        %v794 = vunpack.c.l.b16 %v627
        %v795 = vunpack.c.l.b16 %v628
        %v796 = vunpack.c.l.b16 %v629
        %v797 = vunpack.c.l.b16 %v630
        %v798 = vunpack.c.l.b16 %v631
        %v799 = vunpack.c.l.b16 %v632
        %v800 = vunpack.c.l.b16 %v633
        %v801 = vunpack.c.l.b16 %v634
        %v802 = vunpack.c.l.b16 %v635
        %v803 = vunpack.c.l.b16 %v636
        %v804 = vunpack.c.l.b16 %v637
        %v805 = vunpack.c.l.b16 %v638
        %v806 = vunpack.c.l.b16 %v639
        %v807 = vunpack.c.l.b16 %v640
        %v808 = vunpack.c.l.b16 %v641
        %v809 = vunpack.c.l.b16 %v642
        %v810 = vunpack.c.l.b16 %v643
        %v811 = vunpack.c.l.b16 %v644
        %v812 = vunpack.c.l.b16 %v645
        %v813 = vunpack.c.l.b16 %v646
        %v814 = vunpack.c.l.b16 %v647
        %v815 = vunpack.c.l.b16 %v648
        %v816 = vunpack.c.l.b16 %v649
        %v817 = vunpack.c.l.b16 %v650
        %v818 = vunpack.c.l.b16 %v651
        %v819 = vunpack.c.l.b16 %v652
        %v820 = vunpack.c.l.b16 %v653
        %v821 = vunpack.c.l.b16 %v654
        %v822 = vunpack.c.l.b16 %v655
        %v823 = vunpack.c.l.b16 %v656
        %v824 = vunpack.c.l.b16 %v657
        %v825 = vunpack.c.l.b16 %v658
        %v826 = vunpack.c.l.b16 %v659
        %v827 = vunpack.c.l.b16 %v660
        %v828 = vunpack.c.l.b16 %v661
        %v829 = vunpack.c.l.b16 %v662
        %v830 = vunpack.c.l.b16 %v663
        %v831 = vunpack.c.l.b16 %v664
        %v832 = vunpack.c.l.b16 %v665
        %v833 = vunpack.c.l.b16 %v666
        %v834 = vunpack.c.l.b16 %v667
        %v835 = vunpack.c.l.b16 %v668
        %v836 = vunpack.c.l.b16 %v669
        %v837 = vunpack.c.l.b16 %v670
        %v838 = vunpack.c.l.b16 %v671
        %v839 = vunpack.c.l.b16 %v672
        %v840 = vunpack.c.l.b16 %v673
        %v841 = vunpack.c.l.b16 %v674
        %v842 = vunpack.c.l.b16 %v675
        %v843 = vunpack.c.l.b16 %v676
        %v844 = vunpack.c.l.b16 %v677
        %v845 = vunpack.c.l.b16 %v678
        %v846 = vunpack.c.l.b16 %v679
        %v847 = vunpack.c.l.b16 %v680
        %v848 = vunpack.c.l.b16 %v681
        %v849 = vunpack.c.l.b16 %v682
        %v850 = vunpack.c.l.b16 %v683
        %v851 = vunpack.c.l.b16 %v684
        %v852 = vunpack.c.l.b16 %v685
        %v853 = vunpack.c.l.b16 %v686
        %v854 = vunpack.c.l.b16 %v687
        %v855 = vunpack.c.l.b16 %v688
        %v856 = vunpack.c.l.b16 %v689
        %v857 = vunpack.c.l.b16 %v690
        %v858 = vunpack.c.l.b16 %v691
        %v859 = vunpack.c.l.b16 %v692
        %v860 = vunpack.c.l.b16 %v693
        %v861 = vunpack.c.l.b16 %v694
        %v862 = vunpack.c.l.b16 %v695
        %v863 = vunpack.c.l.b16 %v696
        %v864 = vunpack.c.l.b16 %v697
        %v865 = vunpack.c.l.b16 %v698
        %v866 = vunpack.c.l.b16 %v699
        %v867 = vunpack.c.l.b16 %v700
        %v868 = vunpack.c.l.b16 %v701
        %v869 = vpack.c.b16 %v790, %v789
        %v870 = vpack.c.b16 %v792, %v791
        %v871 = vpack.c.b16 %v794, %v793
        %v872 = vpack.c.b16 %v796, %v795
        %v873 = vpack.c.b16 %v798, %v797
        %v874 = vpack.c.b16 %v800, %v799
        %v875 = vpack.c.b16 %v802, %v801
        %v876 = vpack.c.b16 %v804, %v803
        %v877 = vpack.c.b16 %v806, %v805
        %v878 = vpack.c.b16 %v808, %v807
        %v879 = vpack.c.b16 %v810, %v809
        %v880 = vpack.c.b16 %v812, %v811
        %v881 = vpack.c.b16 %v814, %v813
        %v882 = vpack.c.b16 %v816, %v815
        %v883 = vpack.c.b16 %v818, %v817
        %v884 = vpack.c.b16 %v820, %v819
        %v885 = vpack.c.b16 %v822, %v821
        %v886 = vpack.c.b16 %v824, %v823
        %v887 = vpack.c.b16 %v826, %v825
        %v888 = vpack.c.b16 %v828, %v827
        %v889 = vpack.c.b16 %v830, %v829
        %v890 = vpack.c.b16 %v832, %v831
        %v891 = vpack.c.b16 %v834, %v833
        %v892 = vpack.c.b16 %v836, %v835
        %v893 = vpack.c.b16 %v838, %v837
        %v894 = vpack.c.b16 %v840, %v839
        %v895 = vpack.c.b16 %v842, %v841
        %v896 = vpack.c.b16 %v844, %v843
        %v897 = vpack.c.b16 %v846, %v845
        %v898 = vpack.c.b16 %v848, %v847
        %v899 = vpack.c.b16 %v850, %v849
        %v900 = vpack.c.b16 %v852, %v851
        %v901 = vpack.c.b16 %v854, %v853
        %v902 = vpack.c.b16 %v856, %v855
        %v903 = vpack.c.b16 %v858, %v857
        %v904 = vpack.c.b16 %v860, %v859
        %v905 = vpack.c.b16 %v862, %v861
        %v906 = vpack.c.b16 %v864, %v863
        %v907 = vpack.c.b16 %v866, %v865
        %v908 = vpack.c.b16 %v868, %v867
        %949 = vmatprep.subr.bf16.mxu0 0
        %950 = vmatpush1.bf16.msra.mxu0 %v869
        %951 = vmatprep.subr.bf16.mxu0 0
        %952 = vmatpush1.bf16.msra.mxu0 %v870
        %953 = vmatprep.subr.bf16.mxu0 0
        %954 = vmatpush1.bf16.msra.mxu0 %v871
        %955 = vmatprep.subr.bf16.mxu0 0
        %956 = vmatpush1.bf16.msra.mxu0 %v872
        %957 = vmatprep.subr.bf16.mxu0 0
        %958 = vmatpush1.bf16.msra.mxu0 %v873
        %959 = vmatprep.subr.bf16.mxu0 0
        %960 = vmatpush1.bf16.msra.mxu0 %v874
        %961 = vmatprep.subr.bf16.mxu0 0
        %962 = vmatpush1.bf16.msra.mxu0 %v875
        %963 = vmatprep.subr.bf16.mxu0 0
        %964 = vmatpush1.bf16.msra.mxu0 %v876
        %965 = vmatprep.subr.bf16.mxu0 0
        %966 = vmatpush1.bf16.msra.mxu0 %v877
        %967 = vmatprep.subr.bf16.mxu0 0
        %968 = vmatpush1.bf16.msra.mxu0 %v878
        %969 = vmatprep.subr.bf16.mxu0 0
        %970 = vmatpush1.bf16.msra.mxu0 %v879
        %971 = vmatprep.subr.bf16.mxu0 0
        %972 = vmatpush1.bf16.msra.mxu0 %v880
        %973 = vmatprep.subr.bf16.mxu0 0
        %974 = vmatpush1.bf16.msra.mxu0 %v881
        %975 = vmatprep.subr.bf16.mxu0 0
        %976 = vmatpush1.bf16.msra.mxu0 %v882
        %977 = vmatprep.subr.bf16.mxu0 0
        %978 = vmatpush1.bf16.msra.mxu0 %v883
        %979 = vmatprep.subr.bf16.mxu0 0
        %980 = vmatpush1.bf16.msra.mxu0 %v884
        %981 = vmatprep.mubr.bf16.mxu0 %v603
        %982 = vmatmul.mubr.bf16.gmra.mrb[0].mxu0 %v602
        %v983 = vpop.f32.mrb[0].mxu0
        %v984 = vadd.f32 %v707, %v983
        %v985 = vpop.f32.mrb[0].mxu0
        %v986 = vpop.f32.mrb[0].mxu0
        %v987 = vadd.f32 %v707, %v986
        %v988 = vpop.f32.mrb[0].mxu0
        %989 = vmatprep.mubr.bf16.mxu0 %v608
        %990 = vmatmul.mubr.bf16.gmra.mrb[0].mxu0 %v607
        %v991 = vpop.f32.mrb[0].mxu0
        %v992 = vadd.f32 %v707, %v991
        %v993 = vpop.f32.mrb[0].mxu0
        %v994 = vpop.f32.mrb[0].mxu0
        %v995 = vadd.f32 %v707, %v994
        %v996 = vpop.f32.mrb[0].mxu0
        %997 = vmatprep.mubr.bf16.mxu0 %v613
        %998 = vmatmul.mubr.bf16.gmra.mrb[0].mxu0 %v612
        %v999 = vpop.f32.mrb[0].mxu0
        %v1000 = vadd.f32 %v707, %v999
        %v1001 = vpop.f32.mrb[0].mxu0
        %v1002 = vpop.f32.mrb[0].mxu0
        %v1003 = vadd.f32 %v707, %v1002
        %v1004 = vpop.f32.mrb[0].mxu0
        %1005 = vmatprep.mubr.bf16.mxu0 %v618
        %1006 = vmatmul.mubr.bf16.gmra.mrb[0].mxu0 %v617
        %v1007 = vpop.f32.mrb[0].mxu0
        %v1008 = vadd.f32 %v707, %v1007
        %v1009 = vpop.f32.mrb[0].mxu0
        %v1010 = vpop.f32.mrb[0].mxu0
        %v1011 = vadd.f32 %v707, %v1010
        %v1012 = vpop.f32.mrb[0].mxu0
        %1013 = vdwg.mxu0
        %1014 = vmatprep.subr.bf16.mxu0 0
        %1015 = vmatpush1.bf16.msra.mxu0 %v885
        %1016 = vmatprep.subr.bf16.mxu0 0
        %1017 = vmatpush1.bf16.msra.mxu0 %v886
        %1018 = vmatprep.subr.bf16.mxu0 0
        %1019 = vmatpush1.bf16.msra.mxu0 %v887
        %1020 = vmatprep.subr.bf16.mxu0 0
        %1021 = vmatpush1.bf16.msra.mxu0 %v888
        %1022 = vmatprep.subr.bf16.mxu0 0
        %1023 = vmatpush1.bf16.msra.mxu0 %v889
        %1024 = vmatprep.subr.bf16.mxu0 0
        %1025 = vmatpush1.bf16.msra.mxu0 %v890
        %1026 = vmatprep.subr.bf16.mxu0 0
        %1027 = vmatpush1.bf16.msra.mxu0 %v891
        %1028 = vmatprep.subr.bf16.mxu0 0
        %1029 = vmatpush1.bf16.msra.mxu0 %v892
        %1030 = vmatprep.subr.bf16.mxu0 0
        %1031 = vmatpush1.bf16.msra.mxu0 %v893
        %1032 = vmatprep.subr.bf16.mxu0 0
        %1033 = vmatpush1.bf16.msra.mxu0 %v894
        %1034 = vmatprep.subr.bf16.mxu0 0
        %1035 = vmatpush1.bf16.msra.mxu0 %v895
        %1036 = vmatprep.subr.bf16.mxu0 0
        %1037 = vmatpush1.bf16.msra.mxu0 %v896
        %1038 = vmatprep.subr.bf16.mxu0 0
        %1039 = vmatpush1.bf16.msra.mxu0 %v897
        %1040 = vmatprep.subr.bf16.mxu0 0
        %1041 = vmatpush1.bf16.msra.mxu0 %v898
        %1042 = vmatprep.subr.bf16.mxu0 0
        %1043 = vmatpush1.bf16.msra.mxu0 %v899
        %1044 = vmatprep.subr.bf16.mxu0 0
        %1045 = vmatpush1.bf16.msra.mxu0 %v900
        %1046 = vmatprep.mubr.bf16.mxu0 %v605
        %1047 = vmatmul.mubr.bf16.gmra.mrb[0].mxu0 %v604
        %v1048 = vpop.f32.mrb[0].mxu0
        %v1049 = vadd.f32 %v984, %v1048
        %v1050 = vpop.f32.mrb[0].mxu0
        %v1051 = vpop.f32.mrb[0].mxu0
        %v1052 = vadd.f32 %v987, %v1051
        %v1053 = vpop.f32.mrb[0].mxu0
        %1054 = vmatprep.mubr.bf16.mxu0 %v610
        %1055 = vmatmul.mubr.bf16.gmra.mrb[0].mxu0 %v609
        %v1056 = vpop.f32.mrb[0].mxu0
        %v1057 = vadd.f32 %v992, %v1056
        %v1058 = vpop.f32.mrb[0].mxu0
        %v1059 = vpop.f32.mrb[0].mxu0
        %v1060 = vadd.f32 %v995, %v1059
        %v1061 = vpop.f32.mrb[0].mxu0
        %1062 = vmatprep.mubr.bf16.mxu0 %v615
        %1063 = vmatmul.mubr.bf16.gmra.mrb[0].mxu0 %v614
        %v1064 = vpop.f32.mrb[0].mxu0
        %v1065 = vadd.f32 %v1000, %v1064
        %v1066 = vpop.f32.mrb[0].mxu0
        %v1067 = vpop.f32.mrb[0].mxu0
        %v1068 = vadd.f32 %v1003, %v1067
        %v1069 = vpop.f32.mrb[0].mxu0
        %1070 = vmatprep.mubr.bf16.mxu0 %v620
        %1071 = vmatmul.mubr.bf16.gmra.mrb[0].mxu0 %v619
        %v1072 = vpop.f32.mrb[0].mxu0
        %v1073 = vadd.f32 %v1008, %v1072
        %v1074 = vpop.f32.mrb[0].mxu0
        %v1075 = vpop.f32.mrb[0].mxu0
        %v1076 = vadd.f32 %v1011, %v1075
        %v1077 = vpop.f32.mrb[0].mxu0
        %1078 = vdwg.mxu0
        %1079 = vmatprep.subr.bf16.mxu0 0
        %1080 = vmatpush1.bf16.msra.mxu0 %v901
        %1081 = vmatprep.subr.bf16.mxu0 0
        %1082 = vmatpush1.bf16.msra.mxu0 %v902
        %1083 = vmatprep.subr.bf16.mxu0 0
        %1084 = vmatpush1.bf16.msra.mxu0 %v903
        %1085 = vmatprep.subr.bf16.mxu0 0
        %1086 = vmatpush1.bf16.msra.mxu0 %v904
        %1087 = vmatprep.subr.bf16.mxu0 0
        %1088 = vmatpush1.bf16.msra.mxu0 %v905
        %1089 = vmatprep.subr.bf16.mxu0 0
        %1090 = vmatpush1.bf16.msra.mxu0 %v906
        %1091 = vmatprep.subr.bf16.mxu0 0
        %1092 = vmatpush1.bf16.msra.mxu0 %v907
        %1093 = vmatprep.subr.bf16.mxu0 0
        %1094 = vmatpush1.bf16.msra.mxu0 %v908
        %1095 = vmatprep.subr.bf16.mxu0 0
        %1096 = vmatpush1.bf16.msra.mxu0 0
        %1097 = vmatprep.subr.bf16.mxu0 0
        %1098 = vmatpush1.bf16.msra.mxu0 0
        %1099 = vmatprep.subr.bf16.mxu0 0
        %1100 = vmatpush1.bf16.msra.mxu0 0
        %1101 = vmatprep.subr.bf16.mxu0 0
        %1102 = vmatpush1.bf16.msra.mxu0 0
        %1103 = vmatprep.subr.bf16.mxu0 0
        %1104 = vmatpush1.bf16.msra.mxu0 0
        %1105 = vmatprep.subr.bf16.mxu0 0
        %1106 = vmatpush1.bf16.msra.mxu0 0
        %1107 = vmatprep.subr.bf16.mxu0 0
        %1108 = vmatpush1.bf16.msra.mxu0 0
        %1109 = vmatprep.subr.bf16.mxu0 0
        %1110 = vmatpush1.bf16.msra.mxu0 0
        %1111 = vmatprep.mubr.bf16.mxu0 0
        %1112 = vmatmul.mubr.bf16.gmra.mrb[0].mxu0 %v606
        %v1113 = vpop.f32.mrb[0].mxu0
        %v1114 = vadd.f32 %v1049, %v1113
        %v1115 = vpop.f32.mrb[0].mxu0
        %v1116 = vpop.f32.mrb[0].mxu0
        %v1117 = vadd.f32 %v1052, %v1116
        %v1118 = vpop.f32.mrb[0].mxu0
        %1119 = vmatprep.mubr.bf16.mxu0 0
        %1120 = vmatmul.mubr.bf16.gmra.mrb[0].mxu0 %v611
        %v1121 = vpop.f32.mrb[0].mxu0
        %v1122 = vadd.f32 %v1057, %v1121
        %v1123 = vpop.f32.mrb[0].mxu0
        %v1124 = vpop.f32.mrb[0].mxu0
        %v1125 = vadd.f32 %v1060, %v1124
        %v1126 = vpop.f32.mrb[0].mxu0
        %1127 = vmatprep.mubr.bf16.mxu0 0
        %1128 = vmatmul.mubr.bf16.gmra.mrb[0].mxu0 %v616
        %v1129 = vpop.f32.mrb[0].mxu0
        %v1130 = vadd.f32 %v1065, %v1129
        %v1131 = vpop.f32.mrb[0].mxu0
        %v1132 = vpop.f32.mrb[0].mxu0
        %v1133 = vadd.f32 %v1068, %v1132
        %v1134 = vpop.f32.mrb[0].mxu0
        %1135 = vmatprep.mubr.bf16.mxu0 0
        %1136 = vmatmul.mubr.bf16.gmra.mrb[0].mxu0 %v621
        %v1137 = vpop.f32.mrb[0].mxu0
        %v1138 = vadd.f32 %v1073, %v1137
        %v1139 = vpop.f32.mrb[0].mxu0
        %v1140 = vpop.f32.mrb[0].mxu0
        %v1141 = vadd.f32 %v1076, %v1140
        %v1142 = vpop.f32.mrb[0].mxu0
        %1143 = vdwg.mxu0
        %1144 = vst [vmem:[%s244] sm:$0xff] %v1114
        %1145 = vst [vmem:[%s244 + $0x8] sm:$0xff] %v1117
        %1146 = vst [vmem:[%s244 + $0x10] sm:$0xff] %v1122
        %1147 = vst [vmem:[%s244 + $0x18] sm:$0xff] %v1125
        %1148 = vst [vmem:[%s244 + $0x20] sm:$0xff] %v1130
        %1149 = vst [vmem:[%s244 + $0x28] sm:$0xff] %v1133
        %1150 = vst [vmem:[%s244 + $0x30] sm:$0xff] %v1138
        %1151 = vst [vmem:[%s244 + $0x38] sm:$0xff] %v1141
        %s1152 = sand.u32 %s119, 1
        %s1153 = scalar_lea.sflag [#allocation5], %s1152
        %s1154 = sand.u32 %s119, 1
        %s1155 = smul.addr %s1154, 64
        %s1156 = scalar_lea.vmem [#allocation9], %s1155
        // Predicated region
        $region49: #{tpu_custom_call.1} parent=35 // pred_check
          %p1157 = pneg %p129
        $region50: #{tpu_custom_call.1} parent=35 // pred_check_branch
          %1159 = sbr.rel (%p1157) target = $region52
        $region51: #{tpu_custom_call.1} parent=35 // pred_region
          %s1160 = smul.u32 8, %s22
          %s1162 = ssub.s32 1024, 1024
          %1163 = vsyncadd %s1153, %s1162
          %s1164 = smul.addr %s1160, 128
          %s1165 = scalar_lea.hbm %s4, %s1164
          %s1166 = sshll.u32 %s1156, 4
          %s1167 = int_to_ptr.vmem [resolvable:$true] %s1166
          %1172 = dma.vmem_to_hbm [thread:$0]  %s1167, 1024, %s1165, %s1153, 128, 128, 8
        $region52: #{tpu_custom_call.1} parent=35 // pred_fallthru
          _
      $region36: #{tpu_custom_call.1} parent=5 // pred_fallthru
        _
      %p1173 = scmp.le.s32.totalorder 2, %s17
      // Predicated region
      $region53: #{tpu_custom_call.1} parent=5 // pred_check
        %p1174 = pneg %p1173
      $region54: #{tpu_custom_call.1} parent=5 // pred_check_branch
        %1176 = sbr.rel (%p1174) target = $region56
      $region55: #{tpu_custom_call.1} parent=5 // pred_region
        %s1177 = ssub.s32 %s17, 2
        // Predicated region
        $region57: #{tpu_custom_call.1} parent=55 // pred_check
          %p1178 = pneg %p135
        $region58: #{tpu_custom_call.1} parent=55 // pred_check_branch
          %1180 = sbr.rel (%p1178) target = $region60
        $region59: #{tpu_custom_call.1} parent=55 // pred_region
          %s1181 = sand.u32 %s120, 1
          %s1182 = scalar_lea.sflag [#allocation5], %s1181
          %s1183 = sand.u32 %s120, 1
          %s1184 = smul.addr %s1183, 64
          %s1185 = scalar_lea.vmem [#allocation9], %s1184
          %1186 = dma.done %s1182, 1024
        $region60: #{tpu_custom_call.1} parent=55 // pred_fallthru
          _
      $region56: #{tpu_custom_call.1} parent=5 // pred_fallthru
        _
    $region6: #{tpu_custom_call.1} parent=1 // loop_footer
      %s21 = sadd.s32 1, %s17
    $region7: #{tpu_custom_call.1} parent=1 // loop_footer_branch
      %16 = sbr.rel target = $region3
    $region8: #{tpu_custom_call.1} parent=1 // loop_exit
      _
    %1187 = vsyncpa [#allocation4], 1
    %s1188 = scalar_lea.sflag [#allocation4], 1
    %1189 = vsyncpa %s1188, 1
    %1190 = vsyncpa [#allocation7], 1
    %s1191 = scalar_lea.sflag [#allocation7], 1
    %1192 = vsyncpa %s1191, 1
    %1193 = vsyncpa [#allocation5], 1
    %s1194 = scalar_lea.sflag [#allocation5], 1
    %1195 = vsyncpa %s1194, 1

// kernel: tpu_custom_call.1
$region0: #{tpu_custom_call.1}
  #allocation0 [shape = 'u32[]', space=smem, size = 0x4, offset = 0x4, fixed_abs, tag = 'smem constant byte address 0x4 - core index']
  #allocation1 [shape = 'u32[144,128]{1,0:T(1,128)}', space=vmem, size = 0x12000, scoped, tag = 'internal scratch']
  #allocation2 [shape = 'bf16[64,640]{1,0:T(16,128)(2,1)}', space=vmem, size = 0x14000, scoped, tag = 'scratch operand']
  %s0 = inlined_call_operand.hbm [shape: bf16[2,32,32], index: 0, kind: input, shape index: {}]
  %s1 = inlined_call_operand.hbm [shape: bf16[32,512], index: 1, kind: input, shape index: {}]
  %s2 = inlined_call_operand.hbm [shape: bf16[640,128], index: 2, kind: input, shape index: {}]
  %s3 = inlined_call_operand.vmem [shape: f32[1,128], index: 3, kind: input, shape index: {}]
  %s4 = inlined_call_operand.hbm [shape: f32[128,128], index: 4, kind: output, shape index: {}]
  %s5 = sld [smem:[#allocation0]]
  $region61: #{tpu_custom_call.1} parent=0
    _
  %s7 = ssub.s32 1, %s5
  %s8 = scalar_select 0, %s7, %s5
  $region1: #{tpu_custom_call.1} parent=0
    #allocation3 [shape = 'u8[16384]{0}', space=vmem, size = 0x4000, scoped, tag = 'input window, operand 0, single buffered']
    #allocation4 [shape = 's32[2]{0}', space=sflag, size = 0x8, scoped, tag = 'scoped memory for tpu_custom_call.1']
    #allocation5 [shape = 's32[2]{0}', space=sflag, size = 0x8, scoped, tag = 'scoped memory for tpu_custom_call.1']
    #allocation6 [shape = 'u8[32768]{0}', space=vmem, size = 0x8000, scoped, tag = 'input window, operand 1']
    #allocation7 [shape = 's32[2]{0}', space=sflag, size = 0x8, scoped, tag = 'scoped memory for tpu_custom_call.1']
    #allocation8 [shape = 'u8[163840]{0}', space=vmem, size = 0x28000, scoped, tag = 'input window, operand 2, single buffered']
    #allocation9 [shape = 'u8[65536]{0}', space=vmem, size = 0x10000, scoped, tag = 'output window, operand 0']
    %9 = vsyncpa [#allocation4], 0
    %10 = vsyncpa [#allocation7], 0
    %s11 = scalar_lea.sflag [#allocation7], 1
    %12 = vsyncpa %s11, 0
    %13 = vsyncpa [#allocation5], 0
    %s14 = scalar_lea.sflag [#allocation5], 1
    %15 = vsyncpa %s14, 0
    loop: start=0, step=1, limit=4
    $region2: #{tpu_custom_call.1} parent=1 // loop_pre_header
      _
    $region3: #{tpu_custom_call.1} parent=1 // loop_header
      %s17 = sphi 0, %s21
      %p18 = scmp.ge.s32.totalorder %s17, 4
      %s25 = sphi 0, %s25
      %s27 = sphi 0, %s25
      %s28 = sphi 0, %s27
      %s42 = sphi 0, %s28
      %s48 = sphi 0, %s50
      %s51 = sphi 0, %s48
      %s52 = sphi 0, %s51
      %s68 = sphi 0, %s52
      %s72 = sphi 0, %s72
      %s74 = sphi 0, %s72
      %s75 = sphi 0, %s74
      %s89 = sphi 0, %s75
      %s93 = sphi 0, %s93
      %s95 = sphi 0, %s93
      %s96 = sphi 0, %s95
      %s110 = sphi 0, %s96
      %s116 = sphi 0, %s118
      %s119 = sphi 0, %s116
      %s120 = sphi 0, %s119
      %s136 = sphi 0, %s120
    $region4: #{tpu_custom_call.1} parent=1 // loop_header_branch
      %20 = sbr.rel (%p18) target = $region8
    $region5: #{tpu_custom_call.1} parent=1 // loop_body
      %s22 = ssub.s32 %s17, 1
      %s23 = ssub.s32 %s17, 2
      %s24 = sadd.s32 %s17, 1
      %s26 = sadd.s32 %s25, 1
      %p29 = scmp.eq.s32.totalorder %s17, 1
      %p30 = scmp.ne.s32.totalorder %s25, %s27
      %p31 = scmp.eq.s32.totalorder %s17, 0
      %p32 = por %p30, %p31
      %p33 = scmp.ne.s32.totalorder %s25, %s27
      %p34 = scmp.eq.s32.totalorder %s22, 1
      %p35 = por %p33, %p34
      %p36 = scmp.ne.s32.totalorder %s27, %s28
      %p37 = scmp.eq.s32.totalorder %s22, 0
      %p38 = por %p36, %p37
      %p39 = scmp.ne.s32.totalorder %s27, %s28
      %p40 = scmp.eq.s32.totalorder %s23, 1
      %p41 = por %p39, %p40
      %p43 = scmp.ne.s32.totalorder %s28, %s42
      %p44 = scmp.eq.s32.totalorder %s23, 0
      %p45 = por %p43, %p44
      %s46 = ssub.s32 %s17, %s24
      %p47 = scmp.eq.s32.totalorder %s46, 0
      %s49 = sadd.s32 %s48, 1
      %s50 = scalar_select %p47, %s48, %s49
      %p53 = pneg %p47
      %p54 = scmp.eq.s32.totalorder %s17, 1
      %p55 = por %p53, %p54
      %p56 = scmp.ne.s32.totalorder %s48, %s51
      %p57 = scmp.eq.s32.totalorder %s17, 0
      %p58 = por %p56, %p57
      %p59 = scmp.ne.s32.totalorder %s48, %s51
      %p60 = scmp.eq.s32.totalorder %s22, 1
      %p61 = por %p59, %p60
      %p62 = scmp.ne.s32.totalorder %s51, %s52
      %p63 = scmp.eq.s32.totalorder %s22, 0
      %p64 = por %p62, %p63
      %p65 = scmp.ne.s32.totalorder %s51, %s52
      %p66 = scmp.eq.s32.totalorder %s23, 1
      %p67 = por %p65, %p66
      %p69 = scmp.ne.s32.totalorder %s52, %s68
      %p70 = scmp.eq.s32.totalorder %s23, 0
      %p71 = por %p69, %p70
      %s73 = sadd.s32 %s72, 1
      %p76 = scmp.eq.s32.totalorder %s17, 1
      %p77 = scmp.ne.s32.totalorder %s72, %s74
      %p78 = scmp.eq.s32.totalorder %s17, 0
      %p79 = por %p77, %p78
      %p80 = scmp.ne.s32.totalorder %s72, %s74
      %p81 = scmp.eq.s32.totalorder %s22, 1
      %p82 = por %p80, %p81
      %p83 = scmp.ne.s32.totalorder %s74, %s75
      %p84 = scmp.eq.s32.totalorder %s22, 0
      %p85 = por %p83, %p84
      %p86 = scmp.ne.s32.totalorder %s74, %s75
      %p87 = scmp.eq.s32.totalorder %s23, 1
      %p88 = por %p86, %p87
      %p90 = scmp.ne.s32.totalorder %s75, %s89
      %p91 = scmp.eq.s32.totalorder %s23, 0
      %p92 = por %p90, %p91
      %s94 = sadd.s32 %s93, 1
      %p97 = scmp.eq.s32.totalorder %s17, 1
      %p98 = scmp.ne.s32.totalorder %s93, %s95
      %p99 = scmp.eq.s32.totalorder %s17, 0
      %p100 = por %p98, %p99
      %p101 = scmp.ne.s32.totalorder %s93, %s95
      %p102 = scmp.eq.s32.totalorder %s22, 1
      %p103 = por %p101, %p102
      %p104 = scmp.ne.s32.totalorder %s95, %s96
      %p105 = scmp.eq.s32.totalorder %s22, 0
      %p106 = por %p104, %p105
      %p107 = scmp.ne.s32.totalorder %s95, %s96
      %p108 = scmp.eq.s32.totalorder %s23, 1
      %p109 = por %p107, %p108
      %p111 = scmp.ne.s32.totalorder %s96, %s110
      %p112 = scmp.eq.s32.totalorder %s23, 0
      %p113 = por %p111, %p112
      %s114 = ssub.s32 %s17, %s24
      %p115 = scmp.eq.s32.totalorder %s114, 0
      %s117 = sadd.s32 %s116, 1
      %s118 = scalar_select %p115, %s116, %s117
      %p121 = pneg %p115
      %p122 = scmp.eq.s32.totalorder %s17, 1
      %p123 = por %p121, %p122
      %p124 = scmp.ne.s32.totalorder %s116, %s119
      %p125 = scmp.eq.s32.totalorder %s17, 0
      %p126 = por %p124, %p125
      %p127 = scmp.ne.s32.totalorder %s116, %s119
      %p128 = scmp.eq.s32.totalorder %s22, 1
      %p129 = por %p127, %p128
      %p130 = scmp.ne.s32.totalorder %s119, %s120
      %p131 = scmp.eq.s32.totalorder %s22, 0
      %p132 = por %p130, %p131
      %p133 = scmp.ne.s32.totalorder %s119, %s120
      %p134 = scmp.eq.s32.totalorder %s23, 1
      %p135 = por %p133, %p134
      %p137 = scmp.ne.s32.totalorder %s120, %s136
      %p138 = scmp.eq.s32.totalorder %s23, 0
      %p139 = por %p137, %p138
      %p140 = scmp.le.s32.totalorder 1, %s17
      %p141 = scmp.lt.s32.totalorder %s17, 3
      %p142 = pnand %p140, %p141
      %p143 = pneg %p142
      // Predicated region
      $region9: #{tpu_custom_call.1} parent=5 // pred_check
        _
      $region10: #{tpu_custom_call.1} parent=5 // pred_check_branch
        %145 = sbr.rel (%p142) target = $region12
      $region11: #{tpu_custom_call.1} parent=5 // pred_region
        %s146 = ssub.s32 %s17, 1
        // Predicated region
        $region13: #{tpu_custom_call.1} parent=11 // pred_check
          %p147 = pneg %p38
        $region14: #{tpu_custom_call.1} parent=11 // pred_check_branch
          %149 = sbr.rel (%p147) target = $region16
        $region15: #{tpu_custom_call.1} parent=11 // pred_region
          %s151 = ssub.s32 512, 512
          %152 = vsyncadd [#allocation4], %s151
          %s153 = sshll.u32 [#allocation3], 4
          %s154 = int_to_ptr.vmem [resolvable:$true] %s153
          %159 = dma.hbm_to_vmem [thread:$0]  %s0, 512, %s154, [#allocation4], 64, 64, 4
        $region16: #{tpu_custom_call.1} parent=11 // pred_fallthru
          _
        // Predicated region
        $region17: #{tpu_custom_call.1} parent=11 // pred_check
          %p160 = pneg %p85
        $region18: #{tpu_custom_call.1} parent=11 // pred_check_branch
          %162 = sbr.rel (%p160) target = $region20
        $region19: #{tpu_custom_call.1} parent=11 // pred_region
          %s164 = ssub.s32 5120, 5120
          %165 = vsyncadd [#allocation7], %s164
          %s166 = sshll.u32 [#allocation8], 4
          %s167 = int_to_ptr.vmem [resolvable:$true] %s166
          %172 = dma.hbm_to_vmem [thread:$0]  %s2, 5120, %s167, [#allocation7], 64, 64, 4
        $region20: #{tpu_custom_call.1} parent=11 // pred_fallthru
          _
        // Predicated region
        $region21: #{tpu_custom_call.1} parent=11 // pred_check
          %p173 = pneg %p106
        $region22: #{tpu_custom_call.1} parent=11 // pred_check_branch
          %175 = sbr.rel (%p173) target = $region24
        $region23: #{tpu_custom_call.1} parent=11 // pred_region
          _
        $region24: #{tpu_custom_call.1} parent=11 // pred_fallthru
          _
      $region12: #{tpu_custom_call.1} parent=5 // pred_fallthru
        _
      %p176 = scmp.lt.s32.totalorder %s17, 2
      // Predicated region
      $region25: #{tpu_custom_call.1} parent=5 // pred_check
        %p177 = pneg %p176
      $region26: #{tpu_custom_call.1} parent=5 // pred_check_branch
        %179 = sbr.rel (%p177) target = $region28
      $region27: #{tpu_custom_call.1} parent=5 // pred_region
        // Predicated region
        $region29: #{tpu_custom_call.1} parent=27 // pred_check
          %p180 = pneg %p58
        $region30: #{tpu_custom_call.1} parent=27 // pred_check_branch
          %182 = sbr.rel (%p180) target = $region32
        $region31: #{tpu_custom_call.1} parent=27 // pred_region
          %s183 = sand.u32 %s17, 1
          %s184 = scalar_lea.sflag [#allocation7], %s183
          %s185 = sand.u32 %s48, 1
          %s186 = smul.addr %s185, 32
          %s187 = scalar_lea.vmem [#allocation6], %s186
          %s188 = smul.u32 2, %s17
          %s190 = ssub.s32 512, 512
          %191 = vsyncadd %s184, %s190
          %s192 = smul.addr %s188, 64
          %s193 = scalar_lea.hbm %s1, %s192
          %s194 = sshll.u32 %s187, 4
          %s195 = int_to_ptr.vmem [resolvable:$true] %s194
          %200 = dma.hbm_to_vmem [thread:$0]  %s193, 512, %s195, %s184, 256, 128, 8
        $region32: #{tpu_custom_call.1} parent=27 // pred_fallthru
          _
      $region28: #{tpu_custom_call.1} parent=5 // pred_fallthru
        _
      %p201 = scmp.le.s32.totalorder 1, %s17
      %p202 = scmp.lt.s32.totalorder %s17, 3
      %p203 = pnand %p201, %p202
      %p204 = pneg %p203
      // Predicated region
      $region33: #{tpu_custom_call.1} parent=5 // pred_check
        _
      $region34: #{tpu_custom_call.1} parent=5 // pred_check_branch
        %206 = sbr.rel (%p203) target = $region36
      $region35: #{tpu_custom_call.1} parent=5 // pred_region
        %s207 = ssub.s32 %s17, 1
        // Predicated region
        $region37: #{tpu_custom_call.1} parent=35 // pred_check
          %p208 = pneg %p38
        $region38: #{tpu_custom_call.1} parent=35 // pred_check_branch
          %210 = sbr.rel (%p208) target = $region40
        $region39: #{tpu_custom_call.1} parent=35 // pred_region
          %211 = dma.done [#allocation4], 512
        $region40: #{tpu_custom_call.1} parent=35 // pred_fallthru
          _
        %s212 = sand.u32 %s22, 1
        %s213 = scalar_lea.sflag [#allocation7], %s212
        %s214 = sand.u32 %s51, 1
        %s215 = smul.addr %s214, 32
        %s216 = scalar_lea.vmem [#allocation6], %s215
        // Predicated region
        $region41: #{tpu_custom_call.1} parent=35 // pred_check
          %p217 = pneg %p64
        $region42: #{tpu_custom_call.1} parent=35 // pred_check_branch
          %219 = sbr.rel (%p217) target = $region44
        $region43: #{tpu_custom_call.1} parent=35 // pred_region
          %220 = dma.done %s213, 512
        $region44: #{tpu_custom_call.1} parent=35 // pred_fallthru
          _
        // Predicated region
        $region45: #{tpu_custom_call.1} parent=35 // pred_check
          %p221 = pneg %p85
        $region46: #{tpu_custom_call.1} parent=35 // pred_check_branch
          %223 = sbr.rel (%p221) target = $region48
        $region47: #{tpu_custom_call.1} parent=35 // pred_region
          %224 = dma.done [#allocation7], 5120
        $region48: #{tpu_custom_call.1} parent=35 // pred_fallthru
          _
        %p225 = pneg %p38
        %p226 = pneg %p35
        %s227 = sand.u32 %s22, 1
        %s228 = scalar_lea.sflag [#allocation7], %s227
        %s229 = sand.u32 %s51, 1
        %s230 = smul.addr %s229, 32
        %s231 = scalar_lea.vmem [#allocation6], %s230
        %p232 = pneg %p64
        %p233 = pneg %p61
        %p234 = pneg %p85
        %p235 = pneg %p82
        %p236 = pneg %p106
        %p237 = pneg %p103
        %p238 = pneg %p132
        %p239 = pneg %p129
        %s240 = sand.u32 %s119, 1
        %s241 = scalar_lea.sflag [#allocation5], %s240
        %s242 = sand.u32 %s119, 1
        %s243 = smul.addr %s242, 64
        %s244 = scalar_lea.vmem [#allocation9], %s243
        %s245 = smul.u32 2, %s22
        %s246 = smul.u32 8, %s22
        %v248 = vld [vmem:[%s216] sm:$0xff]
        %v249 = vld [vmem:[%s216 + $0x8] sm:$0xff]
        %v250 = vld [vmem:[%s216 + $0x10] sm:$0xff]
        %v251 = vld [vmem:[%s216 + $0x18] sm:$0xff]
        %v256 = vunpack.c.l.b16 %v248
        %v257 = vunpack.c.l.b16 %v249
        %v258 = vunpack.c.l.b16 %v250
        %v259 = vunpack.c.l.b16 %v251
        %v260 = vpack.c.b16 %v257, %v256
        %v261 = vpack.c.b16 %v259, %v258
        %264 = vst [vmem:[#allocation2] sm:$0xff] %v260
        %265 = vst [vmem:[#allocation2 + $0x28] sm:$0xff] %v261
        %v266 = vunpack.c.h.b16 %v248
        %v267 = vunpack.c.h.b16 %v249
        %v268 = vunpack.c.h.b16 %v250
        %v269 = vunpack.c.h.b16 %v251
        %v270 = vpack.c.b16 %v267, %v266
        %v271 = vpack.c.b16 %v269, %v268
        %274 = vst [vmem:[#allocation2 + $0x50] sm:$0xff] %v270
        %275 = vst [vmem:[#allocation2 + $0x78] sm:$0xff] %v271
        %v276 = vld [vmem:[#allocation3] sm:$0xf]
        %v277 = vld [vmem:[#allocation3 + $0x4] sm:$0xf]
        %v278 = vld [vmem:[#allocation3 + $0x8] sm:$0xf]
        %v279 = vld [vmem:[#allocation3 + $0xc] sm:$0xf]
        %v280 = vunpack.c.l.bf16 %v248
        %v281 = vunpack.c.h.bf16 %v248
        %v282 = vunpack.c.l.bf16 %v249
        %v283 = vunpack.c.h.bf16 %v249
        %v284 = vunpack.c.l.bf16 %v250
        %v285 = vunpack.c.h.bf16 %v250
        %v286 = vunpack.c.l.bf16 %v251
        %v287 = vunpack.c.h.bf16 %v251
        %v292 = vunpack.c.l.b16 %v276
        %v293 = vunpack.c.l.b16 %v277
        %v294 = vunpack.c.l.b16 %v278
        %v295 = vunpack.c.l.b16 %v279
        %v296 = vpack.c.b16 %v293, %v292
        %v297 = vpack.c.b16 %v295, %v294
        %vm298 = vcmask 261120
        %v300 = vsel %vm298, %v296, 0
        %v303 = vsel %vm298, %v297, 0
        %305 = vmatprep.subr.bf16.mxu0 %v270
        %306 = vmatpush1.bf16.msra.mxu0 %v260
        %307 = vmatprep.subr.bf16.mxu0 %v271
        %308 = vmatpush1.bf16.msra.mxu0 %v261
        %309 = vmatprep.subr.bf16.mxu0 0
        %310 = vmatpush1.bf16.msra.mxu0 0
        %311 = vmatprep.subr.bf16.mxu0 0
        %312 = vmatpush1.bf16.msra.mxu0 0
        %313 = vmatprep.subr.bf16.mxu0 0
        %314 = vmatpush1.bf16.msra.mxu0 0
        %315 = vmatprep.subr.bf16.mxu0 0
        %316 = vmatpush1.bf16.msra.mxu0 0
        %317 = vmatprep.subr.bf16.mxu0 0
        %318 = vmatpush1.bf16.msra.mxu0 0
        %319 = vmatprep.subr.bf16.mxu0 0
        %320 = vmatpush1.bf16.msra.mxu0 0
        %321 = vmatprep.subr.bf16.mxu0 0
        %322 = vmatpush1.bf16.msra.mxu0 0
        %323 = vmatprep.subr.bf16.mxu0 0
        %324 = vmatpush1.bf16.msra.mxu0 0
        %325 = vmatprep.subr.bf16.mxu0 0
        %326 = vmatpush1.bf16.msra.mxu0 0
        %327 = vmatprep.subr.bf16.mxu0 0
        %328 = vmatpush1.bf16.msra.mxu0 0
        %329 = vmatprep.subr.bf16.mxu0 0
        %330 = vmatpush1.bf16.msra.mxu0 0
        %331 = vmatprep.subr.bf16.mxu0 0
        %332 = vmatpush1.bf16.msra.mxu0 0
        %333 = vmatprep.subr.bf16.mxu0 0
        %334 = vmatpush1.bf16.msra.mxu0 0
        %335 = vmatprep.subr.bf16.mxu0 0
        %336 = vmatpush1.bf16.msra.mxu0 0
        %337 = vmatprep.mubr.bf16.mxu0 0
        %338 = vmatmul.mubr.bf16.gmra.mrb[0].mxu0 %v300
        %v339 = vpop.f32.mrb[0].mxu0
        %v340 = vadd.f32 0.0, %v339
        %v341 = vpop.f32.mrb[0].mxu0
        %v342 = vadd.f32 0.0, %v341
        %v343 = vpop.f32.mrb[0].mxu0
        %v344 = vadd.f32 0.0, %v343
        %v345 = vpop.f32.mrb[0].mxu0
        %v346 = vadd.f32 0.0, %v345
        %347 = vmatprep.mubr.bf16.mxu0 0
        %348 = vmatmul.mubr.bf16.gmra.mrb[0].mxu0 %v303
        %v349 = vpop.f32.mrb[0].mxu0
        %v350 = vadd.f32 0.0, %v349
        %v351 = vpop.f32.mrb[0].mxu0
        %v352 = vadd.f32 0.0, %v351
        %v353 = vpop.f32.mrb[0].mxu0
        %v354 = vadd.f32 0.0, %v353
        %v355 = vpop.f32.mrb[0].mxu0
        %v356 = vadd.f32 0.0, %v355
        %357 = vdwg.mxu0
        %v358 = vpack.c.bf16 %v344, %v340
        %v359 = vpack.c.bf16 %v346, %v342
        %v360 = vpack.c.bf16 %v354, %v350
        %v361 = vpack.c.bf16 %v356, %v352
        %362 = vst [vmem:[#allocation2 + $0x8] sm:$0xff] %v358
        %363 = vst [vmem:[#allocation2 + $0x30] sm:$0xff] %v360
        %364 = vst [vmem:[#allocation2 + $0x58] sm:$0xff] %v359
        %365 = vst [vmem:[#allocation2 + $0x80] sm:$0xff] %v361
        %366 = vmatprep.subr.bf16.mxu0 %v359
        %367 = vmatpush1.bf16.msra.mxu0 %v358
        %368 = vmatprep.subr.bf16.mxu0 %v361
        %369 = vmatpush1.bf16.msra.mxu0 %v360
        %370 = vmatprep.subr.bf16.mxu0 0
        %371 = vmatpush1.bf16.msra.mxu0 0
        %372 = vmatprep.subr.bf16.mxu0 0
        %373 = vmatpush1.bf16.msra.mxu0 0
        %374 = vmatprep.subr.bf16.mxu0 0
        %375 = vmatpush1.bf16.msra.mxu0 0
        %376 = vmatprep.subr.bf16.mxu0 0
        %377 = vmatpush1.bf16.msra.mxu0 0
        %378 = vmatprep.subr.bf16.mxu0 0
        %379 = vmatpush1.bf16.msra.mxu0 0
        %380 = vmatprep.subr.bf16.mxu0 0
        %381 = vmatpush1.bf16.msra.mxu0 0
        %382 = vmatprep.subr.bf16.mxu0 0
        %383 = vmatpush1.bf16.msra.mxu0 0
        %384 = vmatprep.subr.bf16.mxu0 0
        %385 = vmatpush1.bf16.msra.mxu0 0
        %386 = vmatprep.subr.bf16.mxu0 0
        %387 = vmatpush1.bf16.msra.mxu0 0
        %388 = vmatprep.subr.bf16.mxu0 0
        %389 = vmatpush1.bf16.msra.mxu0 0
        %390 = vmatprep.subr.bf16.mxu0 0
        %391 = vmatpush1.bf16.msra.mxu0 0
        %392 = vmatprep.subr.bf16.mxu0 0
        %393 = vmatpush1.bf16.msra.mxu0 0
        %394 = vmatprep.subr.bf16.mxu0 0
        %395 = vmatpush1.bf16.msra.mxu0 0
        %396 = vmatprep.subr.bf16.mxu0 0
        %397 = vmatpush1.bf16.msra.mxu0 0
        %398 = vmatprep.mubr.bf16.mxu0 0
        %399 = vmatmul.mubr.bf16.gmra.mrb[0].mxu0 %v300
        %v400 = vpop.f32.mrb[0].mxu0
        %v401 = vadd.f32 0.0, %v400
        %v402 = vpop.f32.mrb[0].mxu0
        %v403 = vadd.f32 0.0, %v402
        %v404 = vpop.f32.mrb[0].mxu0
        %v405 = vadd.f32 0.0, %v404
        %v406 = vpop.f32.mrb[0].mxu0
        %v407 = vadd.f32 0.0, %v406
        %408 = vmatprep.mubr.bf16.mxu0 0
        %409 = vmatmul.mubr.bf16.gmra.mrb[0].mxu0 %v303
        %v410 = vpop.f32.mrb[0].mxu0
        %v411 = vadd.f32 0.0, %v410
        %v412 = vpop.f32.mrb[0].mxu0
        %v413 = vadd.f32 0.0, %v412
        %v414 = vpop.f32.mrb[0].mxu0
        %v415 = vadd.f32 0.0, %v414
        %v416 = vpop.f32.mrb[0].mxu0
        %v417 = vadd.f32 0.0, %v416
        %418 = vdwg.mxu0
        %v419 = vmul.f32 %v401, 2.0
        %v420 = vmul.f32 %v403, 2.0
        %v421 = vmul.f32 %v405, 2.0
        %v422 = vmul.f32 %v407, 2.0
        %v423 = vmul.f32 %v411, 2.0
        %v424 = vmul.f32 %v413, 2.0
        %v425 = vmul.f32 %v415, 2.0
        %v426 = vmul.f32 %v417, 2.0
        %v427 = vsub.f32 %v419, %v280
        %v428 = vsub.f32 %v420, %v281
        %v429 = vsub.f32 %v421, %v282
        %v430 = vsub.f32 %v422, %v283
        %v431 = vsub.f32 %v423, %v284
        %v432 = vsub.f32 %v424, %v285
        %v433 = vsub.f32 %v425, %v286
        %v434 = vsub.f32 %v426, %v287
        %v435 = vpack.c.bf16 %v429, %v427
        %v436 = vpack.c.bf16 %v430, %v428
        %v437 = vpack.c.bf16 %v433, %v431
        %v438 = vpack.c.bf16 %v434, %v432
        %439 = vst [vmem:[#allocation2 + $0x10] sm:$0xff] %v435
        %440 = vst [vmem:[#allocation2 + $0x38] sm:$0xff] %v437
        %441 = vst [vmem:[#allocation2 + $0x60] sm:$0xff] %v436
        %442 = vst [vmem:[#allocation2 + $0x88] sm:$0xff] %v438
        %s443 = scalar_lea.vmem [#allocation3], 16
        %v444 = vld [vmem:[%s443] sm:$0xf]
        %v445 = vld [vmem:[%s443 + $0x4] sm:$0xf]
        %v446 = vld [vmem:[%s443 + $0x8] sm:$0xf]
        %v447 = vld [vmem:[%s443 + $0xc] sm:$0xf]
        %v452 = vunpack.c.l.b16 %v444
        %v453 = vunpack.c.l.b16 %v445
        %v454 = vunpack.c.l.b16 %v446
        %v455 = vunpack.c.l.b16 %v447
        %v456 = vpack.c.b16 %v453, %v452
        %v457 = vpack.c.b16 %v455, %v454
        %v459 = vsel %vm298, %v456, 0
        %v462 = vsel %vm298, %v457, 0
        %464 = vmatprep.subr.bf16.mxu0 %v270
        %465 = vmatpush1.bf16.msra.mxu0 %v260
        %466 = vmatprep.subr.bf16.mxu0 %v271
        %467 = vmatpush1.bf16.msra.mxu0 %v261
        %468 = vmatprep.subr.bf16.mxu0 0
        %469 = vmatpush1.bf16.msra.mxu0 0
        %470 = vmatprep.subr.bf16.mxu0 0
        %471 = vmatpush1.bf16.msra.mxu0 0
        %472 = vmatprep.subr.bf16.mxu0 0
        %473 = vmatpush1.bf16.msra.mxu0 0
        %474 = vmatprep.subr.bf16.mxu0 0
        %475 = vmatpush1.bf16.msra.mxu0 0
        %476 = vmatprep.subr.bf16.mxu0 0
        %477 = vmatpush1.bf16.msra.mxu0 0
        %478 = vmatprep.subr.bf16.mxu0 0
        %479 = vmatpush1.bf16.msra.mxu0 0
        %480 = vmatprep.subr.bf16.mxu0 0
        %481 = vmatpush1.bf16.msra.mxu0 0
        %482 = vmatprep.subr.bf16.mxu0 0
        %483 = vmatpush1.bf16.msra.mxu0 0
        %484 = vmatprep.subr.bf16.mxu0 0
        %485 = vmatpush1.bf16.msra.mxu0 0
        %486 = vmatprep.subr.bf16.mxu0 0
        %487 = vmatpush1.bf16.msra.mxu0 0
        %488 = vmatprep.subr.bf16.mxu0 0
        %489 = vmatpush1.bf16.msra.mxu0 0
        %490 = vmatprep.subr.bf16.mxu0 0
        %491 = vmatpush1.bf16.msra.mxu0 0
        %492 = vmatprep.subr.bf16.mxu0 0
        %493 = vmatpush1.bf16.msra.mxu0 0
        %494 = vmatprep.subr.bf16.mxu0 0
        %495 = vmatpush1.bf16.msra.mxu0 0
        %496 = vmatprep.mubr.bf16.mxu0 0
        %497 = vmatmul.mubr.bf16.gmra.mrb[0].mxu0 %v459
        %v498 = vpop.f32.mrb[0].mxu0
        %v499 = vadd.f32 0.0, %v498
        %v500 = vpop.f32.mrb[0].mxu0
        %v501 = vadd.f32 0.0, %v500
        %v502 = vpop.f32.mrb[0].mxu0
        %v503 = vadd.f32 0.0, %v502
        %v504 = vpop.f32.mrb[0].mxu0
        %v505 = vadd.f32 0.0, %v504
        %506 = vmatprep.mubr.bf16.mxu0 0
        %507 = vmatmul.mubr.bf16.gmra.mrb[0].mxu0 %v462
        %v508 = vpop.f32.mrb[0].mxu0
        %v509 = vadd.f32 0.0, %v508
        %v510 = vpop.f32.mrb[0].mxu0
        %v511 = vadd.f32 0.0, %v510
        %v512 = vpop.f32.mrb[0].mxu0
        %v513 = vadd.f32 0.0, %v512
        %v514 = vpop.f32.mrb[0].mxu0
        %v515 = vadd.f32 0.0, %v514
        %516 = vdwg.mxu0
        %v517 = vpack.c.bf16 %v503, %v499
        %v518 = vpack.c.bf16 %v505, %v501
        %v519 = vpack.c.bf16 %v513, %v509
        %v520 = vpack.c.bf16 %v515, %v511
        %521 = vst [vmem:[#allocation2 + $0x18] sm:$0xff] %v517
        %522 = vst [vmem:[#allocation2 + $0x40] sm:$0xff] %v519
        %523 = vst [vmem:[#allocation2 + $0x68] sm:$0xff] %v518
        %524 = vst [vmem:[#allocation2 + $0x90] sm:$0xff] %v520
        %525 = vmatprep.subr.bf16.mxu0 %v518
        %526 = vmatpush1.bf16.msra.mxu0 %v517
        %527 = vmatprep.subr.bf16.mxu0 %v520
        %528 = vmatpush1.bf16.msra.mxu0 %v519
        %529 = vmatprep.subr.bf16.mxu0 0
        %530 = vmatpush1.bf16.msra.mxu0 0
        %531 = vmatprep.subr.bf16.mxu0 0
        %532 = vmatpush1.bf16.msra.mxu0 0
        %533 = vmatprep.subr.bf16.mxu0 0
        %534 = vmatpush1.bf16.msra.mxu0 0
        %535 = vmatprep.subr.bf16.mxu0 0
        %536 = vmatpush1.bf16.msra.mxu0 0
        %537 = vmatprep.subr.bf16.mxu0 0
        %538 = vmatpush1.bf16.msra.mxu0 0
        %539 = vmatprep.subr.bf16.mxu0 0
        %540 = vmatpush1.bf16.msra.mxu0 0
        %541 = vmatprep.subr.bf16.mxu0 0
        %542 = vmatpush1.bf16.msra.mxu0 0
        %543 = vmatprep.subr.bf16.mxu0 0
        %544 = vmatpush1.bf16.msra.mxu0 0
        %545 = vmatprep.subr.bf16.mxu0 0
        %546 = vmatpush1.bf16.msra.mxu0 0
        %547 = vmatprep.subr.bf16.mxu0 0
        %548 = vmatpush1.bf16.msra.mxu0 0
        %549 = vmatprep.subr.bf16.mxu0 0
        %550 = vmatpush1.bf16.msra.mxu0 0
        %551 = vmatprep.subr.bf16.mxu0 0
        %552 = vmatpush1.bf16.msra.mxu0 0
        %553 = vmatprep.subr.bf16.mxu0 0
        %554 = vmatpush1.bf16.msra.mxu0 0
        %555 = vmatprep.subr.bf16.mxu0 0
        %556 = vmatpush1.bf16.msra.mxu0 0
        %557 = vmatprep.mubr.bf16.mxu0 0
        %558 = vmatmul.mubr.bf16.gmra.mrb[0].mxu0 %v459
        %v559 = vpop.f32.mrb[0].mxu0
        %v560 = vadd.f32 0.0, %v559
        %v561 = vpop.f32.mrb[0].mxu0
        %v562 = vadd.f32 0.0, %v561
        %v563 = vpop.f32.mrb[0].mxu0
        %v564 = vadd.f32 0.0, %v563
        %v565 = vpop.f32.mrb[0].mxu0
        %v566 = vadd.f32 0.0, %v565
        %567 = vmatprep.mubr.bf16.mxu0 0
        %568 = vmatmul.mubr.bf16.gmra.mrb[0].mxu0 %v462
        %v569 = vpop.f32.mrb[0].mxu0
        %v570 = vadd.f32 0.0, %v569
        %v571 = vpop.f32.mrb[0].mxu0
        %v572 = vadd.f32 0.0, %v571
        %v573 = vpop.f32.mrb[0].mxu0
        %v574 = vadd.f32 0.0, %v573
        %v575 = vpop.f32.mrb[0].mxu0
        %v576 = vadd.f32 0.0, %v575
        %577 = vdwg.mxu0
        %v578 = vmul.f32 %v560, 2.0
        %v579 = vmul.f32 %v562, 2.0
        %v580 = vmul.f32 %v564, 2.0
        %v581 = vmul.f32 %v566, 2.0
        %v582 = vmul.f32 %v570, 2.0
        %v583 = vmul.f32 %v572, 2.0
        %v584 = vmul.f32 %v574, 2.0
        %v585 = vmul.f32 %v576, 2.0
        %v586 = vsub.f32 %v578, %v280
        %v587 = vsub.f32 %v579, %v281
        %v588 = vsub.f32 %v580, %v282
        %v589 = vsub.f32 %v581, %v283
        %v590 = vsub.f32 %v582, %v284
        %v591 = vsub.f32 %v583, %v285
        %v592 = vsub.f32 %v584, %v286
        %v593 = vsub.f32 %v585, %v287
        %v594 = vpack.c.bf16 %v588, %v586
        %v595 = vpack.c.bf16 %v589, %v587
        %v596 = vpack.c.bf16 %v592, %v590
        %v597 = vpack.c.bf16 %v593, %v591
        %598 = vst [vmem:[#allocation2 + $0x20] sm:$0xff] %v594
        %599 = vst [vmem:[#allocation2 + $0x48] sm:$0xff] %v596
        %600 = vst [vmem:[#allocation2 + $0x70] sm:$0xff] %v595
        %601 = vst [vmem:[#allocation2 + $0x98] sm:$0xff] %v597
        %v602 = vld [vmem:[#allocation2] sm:$0xff]
        %v603 = vld [vmem:[#allocation2 + $0x8] sm:$0xff]
        %v604 = vld [vmem:[#allocation2 + $0x10] sm:$0xff]
        %v605 = vld [vmem:[#allocation2 + $0x18] sm:$0xff]
        %v606 = vld [vmem:[#allocation2 + $0x20] sm:$0xff]
        %v607 = vld [vmem:[#allocation2 + $0x28] sm:$0xff]
        %v608 = vld [vmem:[#allocation2 + $0x30] sm:$0xff]
        %v609 = vld [vmem:[#allocation2 + $0x38] sm:$0xff]
        %v610 = vld [vmem:[#allocation2 + $0x40] sm:$0xff]
        %v611 = vld [vmem:[#allocation2 + $0x48] sm:$0xff]
        %v612 = vld [vmem:[#allocation2 + $0x50] sm:$0xff]
        %v613 = vld [vmem:[#allocation2 + $0x58] sm:$0xff]
        %v614 = vld [vmem:[#allocation2 + $0x60] sm:$0xff]
        %v615 = vld [vmem:[#allocation2 + $0x68] sm:$0xff]
        %v616 = vld [vmem:[#allocation2 + $0x70] sm:$0xff]
        %v617 = vld [vmem:[#allocation2 + $0x78] sm:$0xff]
        %v618 = vld [vmem:[#allocation2 + $0x80] sm:$0xff]
        %v619 = vld [vmem:[#allocation2 + $0x88] sm:$0xff]
        %v620 = vld [vmem:[#allocation2 + $0x90] sm:$0xff]
        %v621 = vld [vmem:[#allocation2 + $0x98] sm:$0xff]
        %v622 = vld [vmem:[#allocation8] sm:$0xf]
        %v623 = vld [vmem:[#allocation8 + $0x4] sm:$0xf]
        %v624 = vld [vmem:[#allocation8 + $0x8] sm:$0xf]
        %v625 = vld [vmem:[#allocation8 + $0xc] sm:$0xf]
        %v626 = vld [vmem:[#allocation8 + $0x10] sm:$0xf]
        %v627 = vld [vmem:[#allocation8 + $0x14] sm:$0xf]
        %v628 = vld [vmem:[#allocation8 + $0x18] sm:$0xf]
        %v629 = vld [vmem:[#allocation8 + $0x1c] sm:$0xf]
        %v630 = vld [vmem:[#allocation8 + $0x20] sm:$0xf]
        %v631 = vld [vmem:[#allocation8 + $0x24] sm:$0xf]
        %v632 = vld [vmem:[#allocation8 + $0x28] sm:$0xf]
        %v633 = vld [vmem:[#allocation8 + $0x2c] sm:$0xf]
        %v634 = vld [vmem:[#allocation8 + $0x30] sm:$0xf]
        %v635 = vld [vmem:[#allocation8 + $0x34] sm:$0xf]
        %v636 = vld [vmem:[#allocation8 + $0x38] sm:$0xf]
        %v637 = vld [vmem:[#allocation8 + $0x3c] sm:$0xf]
        %v638 = vld [vmem:[#allocation8 + $0x40] sm:$0xf]
        %v639 = vld [vmem:[#allocation8 + $0x44] sm:$0xf]
        %v640 = vld [vmem:[#allocation8 + $0x48] sm:$0xf]
        %v641 = vld [vmem:[#allocation8 + $0x4c] sm:$0xf]
        %v642 = vld [vmem:[#allocation8 + $0x50] sm:$0xf]
        %v643 = vld [vmem:[#allocation8 + $0x54] sm:$0xf]
        %v644 = vld [vmem:[#allocation8 + $0x58] sm:$0xf]
        %v645 = vld [vmem:[#allocation8 + $0x5c] sm:$0xf]
        %v646 = vld [vmem:[#allocation8 + $0x60] sm:$0xf]
        %v647 = vld [vmem:[#allocation8 + $0x64] sm:$0xf]
        %v648 = vld [vmem:[#allocation8 + $0x68] sm:$0xf]
        %v649 = vld [vmem:[#allocation8 + $0x6c] sm:$0xf]
        %v650 = vld [vmem:[#allocation8 + $0x70] sm:$0xf]
        %v651 = vld [vmem:[#allocation8 + $0x74] sm:$0xf]
        %v652 = vld [vmem:[#allocation8 + $0x78] sm:$0xf]
        %v653 = vld [vmem:[#allocation8 + $0x7c] sm:$0xf]
        %v654 = vld [vmem:[#allocation8 + $0x80] sm:$0xf]
        %v655 = vld [vmem:[#allocation8 + $0x84] sm:$0xf]
        %v656 = vld [vmem:[#allocation8 + $0x88] sm:$0xf]
        %v657 = vld [vmem:[#allocation8 + $0x8c] sm:$0xf]
        %v658 = vld [vmem:[#allocation8 + $0x90] sm:$0xf]
        %v659 = vld [vmem:[#allocation8 + $0x94] sm:$0xf]
        %v660 = vld [vmem:[#allocation8 + $0x98] sm:$0xf]
        %v661 = vld [vmem:[#allocation8 + $0x9c] sm:$0xf]
        %v662 = vld [vmem:[#allocation8 + $0xa0] sm:$0xf]
        %v663 = vld [vmem:[#allocation8 + $0xa4] sm:$0xf]
        %v664 = vld [vmem:[#allocation8 + $0xa8] sm:$0xf]
        %v665 = vld [vmem:[#allocation8 + $0xac] sm:$0xf]
        %v666 = vld [vmem:[#allocation8 + $0xb0] sm:$0xf]
        %v667 = vld [vmem:[#allocation8 + $0xb4] sm:$0xf]
        %v668 = vld [vmem:[#allocation8 + $0xb8] sm:$0xf]
        %v669 = vld [vmem:[#allocation8 + $0xbc] sm:$0xf]
        %v670 = vld [vmem:[#allocation8 + $0xc0] sm:$0xf]
        %v671 = vld [vmem:[#allocation8 + $0xc4] sm:$0xf]
        %v672 = vld [vmem:[#allocation8 + $0xc8] sm:$0xf]
        %v673 = vld [vmem:[#allocation8 + $0xcc] sm:$0xf]
        %v674 = vld [vmem:[#allocation8 + $0xd0] sm:$0xf]
        %v675 = vld [vmem:[#allocation8 + $0xd4] sm:$0xf]
        %v676 = vld [vmem:[#allocation8 + $0xd8] sm:$0xf]
        %v677 = vld [vmem:[#allocation8 + $0xdc] sm:$0xf]
        %v678 = vld [vmem:[#allocation8 + $0xe0] sm:$0xf]
        %v679 = vld [vmem:[#allocation8 + $0xe4] sm:$0xf]
        %v680 = vld [vmem:[#allocation8 + $0xe8] sm:$0xf]
        %v681 = vld [vmem:[#allocation8 + $0xec] sm:$0xf]
        %v682 = vld [vmem:[#allocation8 + $0xf0] sm:$0xf]
        %v683 = vld [vmem:[#allocation8 + $0xf4] sm:$0xf]
        %v684 = vld [vmem:[#allocation8 + $0xf8] sm:$0xf]
        %v685 = vld [vmem:[#allocation8 + $0xfc] sm:$0xf]
        %v686 = vld [vmem:[#allocation8 + $0x100] sm:$0xf]
        %v687 = vld [vmem:[#allocation8 + $0x104] sm:$0xf]
        %v688 = vld [vmem:[#allocation8 + $0x108] sm:$0xf]
        %v689 = vld [vmem:[#allocation8 + $0x10c] sm:$0xf]
        %v690 = vld [vmem:[#allocation8 + $0x110] sm:$0xf]
        %v691 = vld [vmem:[#allocation8 + $0x114] sm:$0xf]
        %v692 = vld [vmem:[#allocation8 + $0x118] sm:$0xf]
        %v693 = vld [vmem:[#allocation8 + $0x11c] sm:$0xf]
        %v694 = vld [vmem:[#allocation8 + $0x120] sm:$0xf]
        %v695 = vld [vmem:[#allocation8 + $0x124] sm:$0xf]
        %v696 = vld [vmem:[#allocation8 + $0x128] sm:$0xf]
        %v697 = vld [vmem:[#allocation8 + $0x12c] sm:$0xf]
        %v698 = vld [vmem:[#allocation8 + $0x130] sm:$0xf]
        %v699 = vld [vmem:[#allocation8 + $0x134] sm:$0xf]
        %v700 = vld [vmem:[#allocation8 + $0x138] sm:$0xf]
        %v701 = vld [vmem:[#allocation8 + $0x13c] sm:$0xf]
        %v702 = vld [vmem:[%s3] sm:$0x1]
        %v704 = vlaneseq
        %v705 = vshrl.u32 %v704, 7
        %v706 = vsub.s32 0, %v705
        %v707 = vrot.slane %v702, %v706
        %v789 = vunpack.c.l.b16 %v622
        %v790 = vunpack.c.l.b16 %v623
        %v791 = vunpack.c.l.b16 %v624
        %v792 = vunpack.c.l.b16 %v625
        %v793 = vunpack.c.l.b16 %v626
        %v794 = vunpack.c.l.b16 %v627
        %v795 = vunpack.c.l.b16 %v628
        %v796 = vunpack.c.l.b16 %v629
        %v797 = vunpack.c.l.b16 %v630
        %v798 = vunpack.c.l.b16 %v631
        %v799 = vunpack.c.l.b16 %v632
        %v800 = vunpack.c.l.b16 %v633
        %v801 = vunpack.c.l.b16 %v634
        %v802 = vunpack.c.l.b16 %v635
        %v803 = vunpack.c.l.b16 %v636
        %v804 = vunpack.c.l.b16 %v637
        %v805 = vunpack.c.l.b16 %v638
        %v806 = vunpack.c.l.b16 %v639
        %v807 = vunpack.c.l.b16 %v640
        %v808 = vunpack.c.l.b16 %v641
        %v809 = vunpack.c.l.b16 %v642
        %v810 = vunpack.c.l.b16 %v643
        %v811 = vunpack.c.l.b16 %v644
        %v812 = vunpack.c.l.b16 %v645
        %v813 = vunpack.c.l.b16 %v646
        %v814 = vunpack.c.l.b16 %v647
        %v815 = vunpack.c.l.b16 %v648
        %v816 = vunpack.c.l.b16 %v649
        %v817 = vunpack.c.l.b16 %v650
        %v818 = vunpack.c.l.b16 %v651
        %v819 = vunpack.c.l.b16 %v652
        %v820 = vunpack.c.l.b16 %v653
        %v821 = vunpack.c.l.b16 %v654
        %v822 = vunpack.c.l.b16 %v655
        %v823 = vunpack.c.l.b16 %v656
        %v824 = vunpack.c.l.b16 %v657
        %v825 = vunpack.c.l.b16 %v658
        %v826 = vunpack.c.l.b16 %v659
        %v827 = vunpack.c.l.b16 %v660
        %v828 = vunpack.c.l.b16 %v661
        %v829 = vunpack.c.l.b16 %v662
        %v830 = vunpack.c.l.b16 %v663
        %v831 = vunpack.c.l.b16 %v664
        %v832 = vunpack.c.l.b16 %v665
        %v833 = vunpack.c.l.b16 %v666
        %v834 = vunpack.c.l.b16 %v667
        %v835 = vunpack.c.l.b16 %v668
        %v836 = vunpack.c.l.b16 %v669
        %v837 = vunpack.c.l.b16 %v670
        %v838 = vunpack.c.l.b16 %v671
        %v839 = vunpack.c.l.b16 %v672
        %v840 = vunpack.c.l.b16 %v673
        %v841 = vunpack.c.l.b16 %v674
        %v842 = vunpack.c.l.b16 %v675
        %v843 = vunpack.c.l.b16 %v676
        %v844 = vunpack.c.l.b16 %v677
        %v845 = vunpack.c.l.b16 %v678
        %v846 = vunpack.c.l.b16 %v679
        %v847 = vunpack.c.l.b16 %v680
        %v848 = vunpack.c.l.b16 %v681
        %v849 = vunpack.c.l.b16 %v682
        %v850 = vunpack.c.l.b16 %v683
        %v851 = vunpack.c.l.b16 %v684
        %v852 = vunpack.c.l.b16 %v685
        %v853 = vunpack.c.l.b16 %v686
        %v854 = vunpack.c.l.b16 %v687
        %v855 = vunpack.c.l.b16 %v688
        %v856 = vunpack.c.l.b16 %v689
        %v857 = vunpack.c.l.b16 %v690
        %v858 = vunpack.c.l.b16 %v691
        %v859 = vunpack.c.l.b16 %v692
        %v860 = vunpack.c.l.b16 %v693
        %v861 = vunpack.c.l.b16 %v694
        %v862 = vunpack.c.l.b16 %v695
        %v863 = vunpack.c.l.b16 %v696
        %v864 = vunpack.c.l.b16 %v697
        %v865 = vunpack.c.l.b16 %v698
        %v866 = vunpack.c.l.b16 %v699
        %v867 = vunpack.c.l.b16 %v700
        %v868 = vunpack.c.l.b16 %v701
        %v869 = vpack.c.b16 %v790, %v789
        %v870 = vpack.c.b16 %v792, %v791
        %v871 = vpack.c.b16 %v794, %v793
        %v872 = vpack.c.b16 %v796, %v795
        %v873 = vpack.c.b16 %v798, %v797
        %v874 = vpack.c.b16 %v800, %v799
        %v875 = vpack.c.b16 %v802, %v801
        %v876 = vpack.c.b16 %v804, %v803
        %v877 = vpack.c.b16 %v806, %v805
        %v878 = vpack.c.b16 %v808, %v807
        %v879 = vpack.c.b16 %v810, %v809
        %v880 = vpack.c.b16 %v812, %v811
        %v881 = vpack.c.b16 %v814, %v813
        %v882 = vpack.c.b16 %v816, %v815
        %v883 = vpack.c.b16 %v818, %v817
        %v884 = vpack.c.b16 %v820, %v819
        %v885 = vpack.c.b16 %v822, %v821
        %v886 = vpack.c.b16 %v824, %v823
        %v887 = vpack.c.b16 %v826, %v825
        %v888 = vpack.c.b16 %v828, %v827
        %v889 = vpack.c.b16 %v830, %v829
        %v890 = vpack.c.b16 %v832, %v831
        %v891 = vpack.c.b16 %v834, %v833
        %v892 = vpack.c.b16 %v836, %v835
        %v893 = vpack.c.b16 %v838, %v837
        %v894 = vpack.c.b16 %v840, %v839
        %v895 = vpack.c.b16 %v842, %v841
        %v896 = vpack.c.b16 %v844, %v843
        %v897 = vpack.c.b16 %v846, %v845
        %v898 = vpack.c.b16 %v848, %v847
        %v899 = vpack.c.b16 %v850, %v849
        %v900 = vpack.c.b16 %v852, %v851
        %v901 = vpack.c.b16 %v854, %v853
        %v902 = vpack.c.b16 %v856, %v855
        %v903 = vpack.c.b16 %v858, %v857
        %v904 = vpack.c.b16 %v860, %v859
        %v905 = vpack.c.b16 %v862, %v861
        %v906 = vpack.c.b16 %v864, %v863
        %v907 = vpack.c.b16 %v866, %v865
        %v908 = vpack.c.b16 %v868, %v867
        %949 = vmatprep.subr.bf16.mxu0 0
        %950 = vmatpush1.bf16.msra.mxu0 %v869
        %951 = vmatprep.subr.bf16.mxu0 0
        %952 = vmatpush1.bf16.msra.mxu0 %v870
        %953 = vmatprep.subr.bf16.mxu0 0
        %954 = vmatpush1.bf16.msra.mxu0 %v871
        %955 = vmatprep.subr.bf16.mxu0 0
        %956 = vmatpush1.bf16.msra.mxu0 %v872
        %957 = vmatprep.subr.bf16.mxu0 0
        %958 = vmatpush1.bf16.msra.mxu0 %v873
        %959 = vmatprep.subr.bf16.mxu0 0
        %960 = vmatpush1.bf16.msra.mxu0 %v874
        %961 = vmatprep.subr.bf16.mxu0 0
        %962 = vmatpush1.bf16.msra.mxu0 %v875
        %963 = vmatprep.subr.bf16.mxu0 0
        %964 = vmatpush1.bf16.msra.mxu0 %v876
        %965 = vmatprep.subr.bf16.mxu0 0
        %966 = vmatpush1.bf16.msra.mxu0 %v877
        %967 = vmatprep.subr.bf16.mxu0 0
        %968 = vmatpush1.bf16.msra.mxu0 %v878
        %969 = vmatprep.subr.bf16.mxu0 0
        %970 = vmatpush1.bf16.msra.mxu0 %v879
        %971 = vmatprep.subr.bf16.mxu0 0
        %972 = vmatpush1.bf16.msra.mxu0 %v880
        %973 = vmatprep.subr.bf16.mxu0 0
        %974 = vmatpush1.bf16.msra.mxu0 %v881
        %975 = vmatprep.subr.bf16.mxu0 0
        %976 = vmatpush1.bf16.msra.mxu0 %v882
        %977 = vmatprep.subr.bf16.mxu0 0
        %978 = vmatpush1.bf16.msra.mxu0 %v883
        %979 = vmatprep.subr.bf16.mxu0 0
        %980 = vmatpush1.bf16.msra.mxu0 %v884
        %981 = vmatprep.mubr.bf16.mxu0 %v603
        %982 = vmatmul.mubr.bf16.gmra.mrb[0].mxu0 %v602
        %v983 = vpop.f32.mrb[0].mxu0
        %v984 = vadd.f32 %v707, %v983
        %v985 = vpop.f32.mrb[0].mxu0
        %v986 = vpop.f32.mrb[0].mxu0
        %v987 = vadd.f32 %v707, %v986
        %v988 = vpop.f32.mrb[0].mxu0
        %989 = vmatprep.mubr.bf16.mxu0 %v608
        %990 = vmatmul.mubr.bf16.gmra.mrb[0].mxu0 %v607
        %v991 = vpop.f32.mrb[0].mxu0
        %v992 = vadd.f32 %v707, %v991
        %v993 = vpop.f32.mrb[0].mxu0
        %v994 = vpop.f32.mrb[0].mxu0
        %v995 = vadd.f32 %v707, %v994
        %v996 = vpop.f32.mrb[0].mxu0
        %997 = vmatprep.mubr.bf16.mxu0 %v613
        %998 = vmatmul.mubr.bf16.gmra.mrb[0].mxu0 %v612
        %v999 = vpop.f32.mrb[0].mxu0
        %v1000 = vadd.f32 %v707, %v999
        %v1001 = vpop.f32.mrb[0].mxu0
        %v1002 = vpop.f32.mrb[0].mxu0
        %v1003 = vadd.f32 %v707, %v1002
        %v1004 = vpop.f32.mrb[0].mxu0
        %1005 = vmatprep.mubr.bf16.mxu0 %v618
        %1006 = vmatmul.mubr.bf16.gmra.mrb[0].mxu0 %v617
        %v1007 = vpop.f32.mrb[0].mxu0
        %v1008 = vadd.f32 %v707, %v1007
        %v1009 = vpop.f32.mrb[0].mxu0
        %v1010 = vpop.f32.mrb[0].mxu0
        %v1011 = vadd.f32 %v707, %v1010
        %v1012 = vpop.f32.mrb[0].mxu0
        %1013 = vdwg.mxu0
        %1014 = vmatprep.subr.bf16.mxu0 0
        %1015 = vmatpush1.bf16.msra.mxu0 %v885
        %1016 = vmatprep.subr.bf16.mxu0 0
        %1017 = vmatpush1.bf16.msra.mxu0 %v886
        %1018 = vmatprep.subr.bf16.mxu0 0
        %1019 = vmatpush1.bf16.msra.mxu0 %v887
        %1020 = vmatprep.subr.bf16.mxu0 0
        %1021 = vmatpush1.bf16.msra.mxu0 %v888
        %1022 = vmatprep.subr.bf16.mxu0 0
        %1023 = vmatpush1.bf16.msra.mxu0 %v889
        %1024 = vmatprep.subr.bf16.mxu0 0
        %1025 = vmatpush1.bf16.msra.mxu0 %v890
        %1026 = vmatprep.subr.bf16.mxu0 0
        %1027 = vmatpush1.bf16.msra.mxu0 %v891
        %1028 = vmatprep.subr.bf16.mxu0 0
        %1029 = vmatpush1.bf16.msra.mxu0 %v892
        %1030 = vmatprep.subr.bf16.mxu0 0
        %1031 = vmatpush1.bf16.msra.mxu0 %v893
        %1032 = vmatprep.subr.bf16.mxu0 0
        %1033 = vmatpush1.bf16.msra.mxu0 %v894
        %1034 = vmatprep.subr.bf16.mxu0 0
        %1035 = vmatpush1.bf16.msra.mxu0 %v895
        %1036 = vmatprep.subr.bf16.mxu0 0
        %1037 = vmatpush1.bf16.msra.mxu0 %v896
        %1038 = vmatprep.subr.bf16.mxu0 0
        %1039 = vmatpush1.bf16.msra.mxu0 %v897
        %1040 = vmatprep.subr.bf16.mxu0 0
        %1041 = vmatpush1.bf16.msra.mxu0 %v898
        %1042 = vmatprep.subr.bf16.mxu0 0
        %1043 = vmatpush1.bf16.msra.mxu0 %v899
        %1044 = vmatprep.subr.bf16.mxu0 0
        %1045 = vmatpush1.bf16.msra.mxu0 %v900
        %1046 = vmatprep.mubr.bf16.mxu0 %v605
        %1047 = vmatmul.mubr.bf16.gmra.mrb[0].mxu0 %v604
        %v1048 = vpop.f32.mrb[0].mxu0
        %v1049 = vadd.f32 %v984, %v1048
        %v1050 = vpop.f32.mrb[0].mxu0
        %v1051 = vpop.f32.mrb[0].mxu0
        %v1052 = vadd.f32 %v987, %v1051
        %v1053 = vpop.f32.mrb[0].mxu0
        %1054 = vmatprep.mubr.bf16.mxu0 %v610
        %1055 = vmatmul.mubr.bf16.gmra.mrb[0].mxu0 %v609
        %v1056 = vpop.f32.mrb[0].mxu0
        %v1057 = vadd.f32 %v992, %v1056
        %v1058 = vpop.f32.mrb[0].mxu0
        %v1059 = vpop.f32.mrb[0].mxu0
        %v1060 = vadd.f32 %v995, %v1059
        %v1061 = vpop.f32.mrb[0].mxu0
        %1062 = vmatprep.mubr.bf16.mxu0 %v615
        %1063 = vmatmul.mubr.bf16.gmra.mrb[0].mxu0 %v614
        %v1064 = vpop.f32.mrb[0].mxu0
        %v1065 = vadd.f32 %v1000, %v1064
        %v1066 = vpop.f32.mrb[0].mxu0
        %v1067 = vpop.f32.mrb[0].mxu0
        %v1068 = vadd.f32 %v1003, %v1067
        %v1069 = vpop.f32.mrb[0].mxu0
        %1070 = vmatprep.mubr.bf16.mxu0 %v620
        %1071 = vmatmul.mubr.bf16.gmra.mrb[0].mxu0 %v619
        %v1072 = vpop.f32.mrb[0].mxu0
        %v1073 = vadd.f32 %v1008, %v1072
        %v1074 = vpop.f32.mrb[0].mxu0
        %v1075 = vpop.f32.mrb[0].mxu0
        %v1076 = vadd.f32 %v1011, %v1075
        %v1077 = vpop.f32.mrb[0].mxu0
        %1078 = vdwg.mxu0
        %1079 = vmatprep.subr.bf16.mxu0 0
        %1080 = vmatpush1.bf16.msra.mxu0 %v901
        %1081 = vmatprep.subr.bf16.mxu0 0
        %1082 = vmatpush1.bf16.msra.mxu0 %v902
        %1083 = vmatprep.subr.bf16.mxu0 0
        %1084 = vmatpush1.bf16.msra.mxu0 %v903
        %1085 = vmatprep.subr.bf16.mxu0 0
        %1086 = vmatpush1.bf16.msra.mxu0 %v904
        %1087 = vmatprep.subr.bf16.mxu0 0
        %1088 = vmatpush1.bf16.msra.mxu0 %v905
        %1089 = vmatprep.subr.bf16.mxu0 0
        %1090 = vmatpush1.bf16.msra.mxu0 %v906
        %1091 = vmatprep.subr.bf16.mxu0 0
        %1092 = vmatpush1.bf16.msra.mxu0 %v907
        %1093 = vmatprep.subr.bf16.mxu0 0
        %1094 = vmatpush1.bf16.msra.mxu0 %v908
        %1095 = vmatprep.subr.bf16.mxu0 0
        %1096 = vmatpush1.bf16.msra.mxu0 0
        %1097 = vmatprep.subr.bf16.mxu0 0
        %1098 = vmatpush1.bf16.msra.mxu0 0
        %1099 = vmatprep.subr.bf16.mxu0 0
        %1100 = vmatpush1.bf16.msra.mxu0 0
        %1101 = vmatprep.subr.bf16.mxu0 0
        %1102 = vmatpush1.bf16.msra.mxu0 0
        %1103 = vmatprep.subr.bf16.mxu0 0
        %1104 = vmatpush1.bf16.msra.mxu0 0
        %1105 = vmatprep.subr.bf16.mxu0 0
        %1106 = vmatpush1.bf16.msra.mxu0 0
        %1107 = vmatprep.subr.bf16.mxu0 0
        %1108 = vmatpush1.bf16.msra.mxu0 0
        %1109 = vmatprep.subr.bf16.mxu0 0
        %1110 = vmatpush1.bf16.msra.mxu0 0
        %1111 = vmatprep.mubr.bf16.mxu0 0
        %1112 = vmatmul.mubr.bf16.gmra.mrb[0].mxu0 %v606
        %v1113 = vpop.f32.mrb[0].mxu0
        %v1114 = vadd.f32 %v1049, %v1113
        %v1115 = vpop.f32.mrb[0].mxu0
        %v1116 = vpop.f32.mrb[0].mxu0
        %v1117 = vadd.f32 %v1052, %v1116
        %v1118 = vpop.f32.mrb[0].mxu0
        %1119 = vmatprep.mubr.bf16.mxu0 0
        %1120 = vmatmul.mubr.bf16.gmra.mrb[0].mxu0 %v611
        %v1121 = vpop.f32.mrb[0].mxu0
        %v1122 = vadd.f32 %v1057, %v1121
        %v1123 = vpop.f32.mrb[0].mxu0
        %v1124 = vpop.f32.mrb[0].mxu0
        %v1125 = vadd.f32 %v1060, %v1124
        %v1126 = vpop.f32.mrb[0].mxu0
        %1127 = vmatprep.mubr.bf16.mxu0 0
        %1128 = vmatmul.mubr.bf16.gmra.mrb[0].mxu0 %v616
        %v1129 = vpop.f32.mrb[0].mxu0
        %v1130 = vadd.f32 %v1065, %v1129
        %v1131 = vpop.f32.mrb[0].mxu0
        %v1132 = vpop.f32.mrb[0].mxu0
        %v1133 = vadd.f32 %v1068, %v1132
        %v1134 = vpop.f32.mrb[0].mxu0
        %1135 = vmatprep.mubr.bf16.mxu0 0
        %1136 = vmatmul.mubr.bf16.gmra.mrb[0].mxu0 %v621
        %v1137 = vpop.f32.mrb[0].mxu0
        %v1138 = vadd.f32 %v1073, %v1137
        %v1139 = vpop.f32.mrb[0].mxu0
        %v1140 = vpop.f32.mrb[0].mxu0
        %v1141 = vadd.f32 %v1076, %v1140
        %v1142 = vpop.f32.mrb[0].mxu0
        %1143 = vdwg.mxu0
        %1144 = vst [vmem:[%s244] sm:$0xff] %v1114
        %1145 = vst [vmem:[%s244 + $0x8] sm:$0xff] %v1117
        %1146 = vst [vmem:[%s244 + $0x10] sm:$0xff] %v1122
        %1147 = vst [vmem:[%s244 + $0x18] sm:$0xff] %v1125
        %1148 = vst [vmem:[%s244 + $0x20] sm:$0xff] %v1130
        %1149 = vst [vmem:[%s244 + $0x28] sm:$0xff] %v1133
        %1150 = vst [vmem:[%s244 + $0x30] sm:$0xff] %v1138
        %1151 = vst [vmem:[%s244 + $0x38] sm:$0xff] %v1141
        %s1152 = sand.u32 %s119, 1
        %s1153 = scalar_lea.sflag [#allocation5], %s1152
        %s1154 = sand.u32 %s119, 1
        %s1155 = smul.addr %s1154, 64
        %s1156 = scalar_lea.vmem [#allocation9], %s1155
        // Predicated region
        $region49: #{tpu_custom_call.1} parent=35 // pred_check
          %p1157 = pneg %p129
        $region50: #{tpu_custom_call.1} parent=35 // pred_check_branch
          %1159 = sbr.rel (%p1157) target = $region52
        $region51: #{tpu_custom_call.1} parent=35 // pred_region
          %s1160 = smul.u32 8, %s22
          %s1162 = ssub.s32 1024, 1024
          %1163 = vsyncadd %s1153, %s1162
          %s1164 = smul.addr %s1160, 128
          %s1165 = scalar_lea.hbm %s4, %s1164
          %s1166 = sshll.u32 %s1156, 4
          %s1167 = int_to_ptr.vmem [resolvable:$true] %s1166
          %1172 = dma.vmem_to_hbm [thread:$0]  %s1167, 1024, %s1165, %s1153, 128, 128, 8
        $region52: #{tpu_custom_call.1} parent=35 // pred_fallthru
          _
      $region36: #{tpu_custom_call.1} parent=5 // pred_fallthru
        _
      %p1173 = scmp.le.s32.totalorder 2, %s17
      // Predicated region
      $region53: #{tpu_custom_call.1} parent=5 // pred_check
        %p1174 = pneg %p1173
      $region54: #{tpu_custom_call.1} parent=5 // pred_check_branch
        %1176 = sbr.rel (%p1174) target = $region56
      $region55: #{tpu_custom_call.1} parent=5 // pred_region
        %s1177 = ssub.s32 %s17, 2
        // Predicated region
        $region57: #{tpu_custom_call.1} parent=55 // pred_check
          %p1178 = pneg %p135
        $region58: #{tpu_custom_call.1} parent=55 // pred_check_branch
          %1180 = sbr.rel (%p1178) target = $region60
        $region59: #{tpu_custom_call.1} parent=55 // pred_region
          %s1181 = sand.u32 %s120, 1
          %s1182 = scalar_lea.sflag [#allocation5], %s1181
          %s1183 = sand.u32 %s120, 1
          %s1184 = smul.addr %s1183, 64
          %s1185 = scalar_lea.vmem [#allocation9], %s1184
          %1186 = dma.done %s1182, 1024
        $region60: #{tpu_custom_call.1} parent=55 // pred_fallthru
          _
      $region56: #{tpu_custom_call.1} parent=5 // pred_fallthru
        _
    $region6: #{tpu_custom_call.1} parent=1 // loop_footer
      %s21 = sadd.s32 1, %s17
    $region7: #{tpu_custom_call.1} parent=1 // loop_footer_branch
      %16 = sbr.rel target = $region3
    $region8: #{tpu_custom_call.1} parent=1 // loop_exit
      _
    %1187 = vsyncpa [#allocation4], 1
    %s1188 = scalar_lea.sflag [#allocation4], 1
    %1189 = vsyncpa %s1188, 1
    %1190 = vsyncpa [#allocation7], 1
    %s1191 = scalar_lea.sflag [#allocation7], 1
    %1192 = vsyncpa %s1191, 1
    %1193 = vsyncpa [#allocation5], 1
    %s1194 = scalar_lea.sflag [#allocation5], 1
    %1195 = vsyncpa %s1194, 1

</llo_original>
